<compile_context>
chip_gen: v5e
topology: v5e:2x2
jax: 0.10.0
libtpu: 0.0.40
codegen_flags: <defaults>
</compile_context>

<pallas_src>
import functools

import jax
import jax.numpy as jnp
from jax.experimental import pallas as pl
from jax.experimental.pallas import tpu as pltpu

EPS = 1e-5  # torch.nn.LayerNorm default


# ----------------------------------------------------------------------------------
# Kernel 1: input LayerNorm + fused projections (left/right proj, left/right gate,
#           output gate), channel-major 2-D, gridded over tiles of the pair dim M=N*N.
# ----------------------------------------------------------------------------------
def _proj_kernel(act_ref, mask_ref, ln_ref, wcat_ref, bcat_ref,
                 left_ref, right_ref, gate_ref, *, ci):
    a = act_ref[...].astype(jnp.float32)                       # [C, BM]
    mu = jnp.mean(a, axis=0, keepdims=True)                    # LN over channels
    d = a - mu
    var = jnp.mean(d * d, axis=0, keepdims=True)
    x = d * jax.lax.rsqrt(var + EPS) * ln_ref[:, 0:1] + ln_ref[:, 1:2]   # [C, BM]

    # One wide bf16 MXU matmul for all five projections, f32 accumulate.
    p = jnp.dot(wcat_ref[...], x.astype(jnp.bfloat16),
                preferred_element_type=jnp.float32) + bcat_ref[...]      # [4Ci+C, BM]

    m = mask_ref[...]                                           # [1, BM]
    left = m * p[0:ci] * jax.nn.sigmoid(p[2 * ci:3 * ci])       # [Ci, BM]
    right = m * p[ci:2 * ci] * jax.nn.sigmoid(p[3 * ci:4 * ci])  # [Ci, BM]
    gate = jax.nn.sigmoid(p[4 * ci:])                           # [C, BM]

    left_ref[...] = left.astype(left_ref.dtype)
    right_ref[...] = right.astype(right_ref.dtype)
    gate_ref[...] = gate.astype(gate_ref.dtype)


# ----------------------------------------------------------------------------------
# Kernel 2: triangle einsum as a channel-batched MXU matmul.
#   a: [BC, N, N] = [c, i, k],  b: [BC, N, N] = [c, j, k]  ->  y: [c, i, j]
# (the wrapper pre-arranges operands so both equations reduce to this one form)
# ----------------------------------------------------------------------------------
def _triangle_kernel(a_ref, b_ref, y_ref):
    y_ref[...] = jax.lax.dot_general(
        a_ref[...], b_ref[...],
        dimension_numbers=(((2,), (2,)), ((0,), (0,))),
        preferred_element_type=jnp.float32)


# ----------------------------------------------------------------------------------
# Kernel 3: center LayerNorm + output projection + gating, channel-major 2-D,
#           gridded over tiles of the pair dim.
# ----------------------------------------------------------------------------------
def _out_kernel(y_ref, gate_ref, ln_ref, wo_ref, bo_ref, out_ref):
    y = y_ref[...]                                              # [Ci, BM] f32
    mu = jnp.mean(y, axis=0, keepdims=True)
    d = y - mu
    var = jnp.mean(d * d, axis=0, keepdims=True)
    yn = d * jax.lax.rsqrt(var + EPS) * ln_ref[:, 0:1] + ln_ref[:, 1:2]

    o = jnp.dot(wo_ref[...], yn.astype(jnp.bfloat16),
                preferred_element_type=jnp.float32) + bo_ref[...]        # [C, BM]
    out_ref[...] = (o * gate_ref[...]).astype(out_ref.dtype)


# ----------------------------------------------------------------------------------
# Wrapper
# ----------------------------------------------------------------------------------
@functools.partial(jax.jit, static_argnames=('equation', 'block_m', 'block_c'))
def triangle_multiplication(act, mask, params, equation='ikc,jkc->ijc',
                            block_m=128, block_c=16):
    """Pallas implementation. params holds PyTorch-convention tensors (Linear W: [out, in])."""
    N, N2, C = act.shape
    assert N == N2
    Ci = params['left_projection_w'].shape[0]
    assert Ci == C, "module declares center_layer_norm/output_projection over act_dim"
    M = N * N
    ctot = 4 * Ci + C
    outgoing = (equation == 'ikc,jkc->ijc')

    f32, bf16 = jnp.float32, jnp.bfloat16

    # Channel-major, lane-dense layouts (host-side layout plumbing, free-ish in XLA).
    act_cm = jnp.asarray(act, f32).reshape(M, C).T              # [C, M]
    mask_cm = jnp.asarray(mask, f32).reshape(1, M)              # [1, M]

    # Fused projection weight/bias (PyTorch [out, in] rows stacked, used untransposed).
    w_cat = jnp.concatenate(
        [params['left_projection_w'], params['right_projection_w'],
         params['left_gate_w'], params['right_gate_w'],
         params['gating_linear_w']], axis=0).astype(bf16)        # [4Ci+C, C]
    b_cat = jnp.concatenate(
        [params['left_projection_b'], params['right_projection_b'],
         params['left_gate_b'], params['right_gate_b'],
         params['gating_linear_b']], axis=0).astype(f32).reshape(ctot, 1)
    ln_in = jnp.stack([params['ln_in_w'], params['ln_in_b']], axis=1).astype(f32)   # [C, 2]
    ln_c = jnp.stack([params['ln_c_w'], params['ln_c_b']], axis=1).astype(f32)      # [C, 2]
    w_out = jnp.asarray(params['output_projection_w'], bf16)                        # [C, Ci]
    b_out = jnp.asarray(params['output_projection_b'], f32).reshape(C, 1)

    bm = block_m if (M % block_m == 0 and block_m % 128 == 0) else M
    bc = block_c if Ci % block_c == 0 else Ci
    n_grid = M // bm
    par = pltpu.CompilerParams(dimension_semantics=("parallel",))

    # --- stage 1: LN + fused projections -------------------------------------------
    left_cm, right_cm, gate_cm = pl.pallas_call(
        functools.partial(_proj_kernel, ci=Ci),
        grid=(n_grid,),
        in_specs=[
            pl.BlockSpec((C, bm), lambda i: (0, i)),
            pl.BlockSpec((1, bm), lambda i: (0, i)),
            pl.BlockSpec((C, 2), lambda i: (0, 0)),
            pl.BlockSpec((ctot, C), lambda i: (0, 0)),
            pl.BlockSpec((ctot, 1), lambda i: (0, 0)),
        ],
        out_specs=(
            pl.BlockSpec((Ci, bm), lambda i: (0, i)),
            pl.BlockSpec((Ci, bm), lambda i: (0, i)),
            pl.BlockSpec((C, bm), lambda i: (0, i)),
        ),
        out_shape=(
            jax.ShapeDtypeStruct((Ci, M), bf16),
            jax.ShapeDtypeStruct((Ci, M), bf16),
            jax.ShapeDtypeStruct((C, M), f32),
        ),
        compiler_params=par,
    )(act_cm, mask_cm, ln_in, w_cat, b_cat)

    # --- stage 2: triangle einsum on the MXU (channel-batched matmul) ---------------
    # Free XLA reshapes (channel-major is contiguous) to [C, N, N].
    l3 = left_cm.reshape(Ci, N, N)                              # [c, a, b] = left[a, b, c]
    r3 = right_cm.reshape(Ci, N, N)
    if outgoing:   # out[i,j,c] = sum_k left[i,k,c] * right[j,k,c]
        a3, b3 = l3, r3
    else:          # out[i,j,c] = sum_k left[k,j,c] * right[k,i,c]
        a3, b3 = jnp.swapaxes(r3, 1, 2), jnp.swapaxes(l3, 1, 2)

    y3 = pl.pallas_call(
        _triangle_kernel,
        grid=(Ci // bc,),
        in_specs=[pl.BlockSpec((bc, N, N), lambda c: (c, 0, 0)),
                  pl.BlockSpec((bc, N, N), lambda c: (c, 0, 0))],
        out_specs=pl.BlockSpec((bc, N, N), lambda c: (c, 0, 0)),
        out_shape=jax.ShapeDtypeStruct((Ci, N, N), f32),
        compiler_params=par,
    )(a3, b3)

    # --- stage 3: center LN + output projection + gate ------------------------------
    y_cm = y3.reshape(Ci, M)
    out_cm = pl.pallas_call(
        _out_kernel,
        grid=(n_grid,),
        in_specs=[
            pl.BlockSpec((Ci, bm), lambda i: (0, i)),
            pl.BlockSpec((C, bm), lambda i: (0, i)),
            pl.BlockSpec((C, 2), lambda i: (0, 0)),
            pl.BlockSpec((C, Ci), lambda i: (0, 0)),
            pl.BlockSpec((C, 1), lambda i: (0, 0)),
        ],
        out_specs=pl.BlockSpec((C, bm), lambda i: (0, i)),
        out_shape=jax.ShapeDtypeStruct((C, M), f32),
        compiler_params=par,
    )(y_cm, gate_cm, ln_c, w_out, b_out)

    return out_cm.T.reshape(N, N, C)                            # back to [N_res, N_res, c_z]


# ----------------------------------------------------------------------------------
# Pure-JAX reference (bf16_matmul=True mirrors the kernel's matmul precision;
# bf16_matmul=False is the full-f32 PyTorch-path reference).
# ----------------------------------------------------------------------------------
def triangle_multiplication_ref(act, mask, params, equation='ikc,jkc->ijc',
                                bf16_matmul=False):
    f32 = jnp.float32
    m = mask[..., None].astype(f32)

    def ln(x, w, b):
        mu = x.mean(-1, keepdims=True)
        var = ((x - mu) ** 2).mean(-1, keepdims=True)
        return (x - mu) * jax.lax.rsqrt(var + EPS) * w + b

    def lin(x, w, b):  # PyTorch Linear: y = x @ W^T + b
        if bf16_matmul:
            y = jnp.einsum('...c,oc->...o', x.astype(jnp.bfloat16), w.astype(jnp.bfloat16),
                           preferred_element_type=f32)
        else:
            y = jnp.einsum('...c,oc->...o', x, w, precision=jax.lax.Precision.HIGHEST)
        return y + b

    x = ln(act.astype(f32), params['ln_in_w'], params['ln_in_b'])
    left = m * lin(x, params['left_projection_w'], params['left_projection_b'])
    right = m * lin(x, params['right_projection_w'], params['right_projection_b'])
    left = left * jax.nn.sigmoid(lin(x, params['left_gate_w'], params['left_gate_b']))
    right = right * jax.nn.sigmoid(lin(x, params['right_gate_w'], params['right_gate_b']))
    if bf16_matmul:
        y = jnp.einsum(equation, left.astype(jnp.bfloat16), right.astype(jnp.bfloat16),
                       preferred_element_type=f32)
    else:
        y = jnp.einsum(equation, left, right, precision=jax.lax.Precision.HIGHEST)
    y = ln(y, params['ln_c_w'], params['ln_c_b'])
    y = lin(y, params['output_projection_w'], params['output_projection_b'])
    gate = jax.nn.sigmoid(lin(x, params['gating_linear_w'], params['gating_linear_b']))
    return y * gate


def make_params(key, act_dim, num_intermediate):
    """Deterministic synthetic parameters with the module's shapes (PyTorch convention)."""
    ks = jax.random.split(key, 16)
    n01 = lambda k, s: 0.1 * jax.random.normal(k, s, jnp.float32)
    C, Ci = act_dim, num_intermediate
    return {
        'ln_in_w': 1.0 + 0.05 * jax.random.normal(ks[0], (C,), jnp.float32),
        'ln_in_b': n01(ks[1], (C,)),
        'left_projection_w': n01(ks[2], (Ci, C)), 'left_projection_b': n01(ks[3], (Ci,)),
        'right_projection_w': n01(ks[4], (Ci, C)), 'right_projection_b': n01(ks[5], (Ci,)),
        'left_gate_w': n01(ks[6], (Ci, C)), 'left_gate_b': n01(ks[7], (Ci,)),
        'right_gate_w': n01(ks[8], (Ci, C)), 'right_gate_b': n01(ks[9], (Ci,)),
        'ln_c_w': 1.0 + 0.05 * jax.random.normal(ks[10], (C,), jnp.float32),
        'ln_c_b': n01(ks[11], (C,)),
        'output_projection_w': n01(ks[12], (C, C)), 'output_projection_b': n01(ks[13], (C,)),
        'gating_linear_w': n01(ks[14], (C, C)), 'gating_linear_b': n01(ks[15], (C,)),
    }


if __name__ == "__main__":
    N_RES = 16       # N_res
    ACT_DIM = 32     # c_z == num_intermediate_channel (required by the module's layer shapes)

    key = jax.random.PRNGKey(0)
    k_act, k_mask, k_par = jax.random.split(key, 3)
    act = jax.random.normal(k_act, (N_RES, N_RES, ACT_DIM), jnp.float32)
    mask = (jax.random.uniform(k_mask, (N_RES, N_RES)) > 0.2).astype(jnp.float32)
    params = make_params(k_par, ACT_DIM, ACT_DIM)

    for eq in ('ikc,jkc->ijc', 'kjc,kic->ijc'):   # outgoing / incoming triangle edges
        out = jax.block_until_ready(triangle_multiplication(act, mask, params, equation=eq))
        assert out.shape == (N_RES, N_RES, ACT_DIM) and out.dtype == jnp.float32

        # Matched-precision reference (bf16 single-pass matmuls, f32 elementwise).
        ref_matched = triangle_multiplication_ref(act, mask, params, equation=eq,
                                                  bf16_matmul=True)
        err_m = float(jnp.max(jnp.abs(out - ref_matched)))
        assert jnp.allclose(out, ref_matched, rtol=1e-2, atol=1e-2), (eq, err_m)

        # Sanity check against the full-f32 (Precision.HIGHEST) reference; slightly
        # looser because the kernel intentionally uses single-pass bf16 MXU matmuls.
        ref_f32 = triangle_multiplication_ref(act, mask, params, equation=eq,
                                              bf16_matmul=False)
        err_f = float(jnp.max(jnp.abs(out - ref_f32)))
        assert jnp.allclose(out, ref_f32, rtol=3e-2, atol=3e-2), (eq, err_f)

    print("KERNEL_OK")
</pallas_src>

<mosaic_0001>
module attributes {stable_mosaic.version = 11 : i64} {
  func.func @_proj_kernel(%arg0: i32, %arg1: memref<32x128xf32, #tpu.memory_space<vmem>>, %arg2: memref<1x128xf32, #tpu.memory_space<vmem>>, %arg3: memref<32x2xf32, #tpu.memory_space<vmem>>, %arg4: memref<160x32xbf16, #tpu.memory_space<vmem>>, %arg5: memref<160x1xf32, #tpu.memory_space<vmem>>, %arg6: memref<32x128xbf16, #tpu.memory_space<vmem>>, %arg7: memref<32x128xbf16, #tpu.memory_space<vmem>>, %arg8: memref<32x128xf32, #tpu.memory_space<vmem>>) attributes {dimension_semantics = [#tpu.dimension_semantics<parallel>], iteration_bounds = array<i64: 2>, scalar_prefetch = 0 : i64, scratch_operands = 0 : i64, tpu.core_type = #tpu.core_type<tc>, window_params = [{transform_indices = @transform_0, window_bounds = array<i64: 32, 128>}, {transform_indices = @transform_1, window_bounds = array<i64: 1, 128>}, {pipeline_mode = #tpu.pipeline_mode<synchronous>, transform_indices = @transform_2, window_bounds = array<i64: 32, 2>}, {pipeline_mode = #tpu.pipeline_mode<synchronous>, transform_indices = @transform_3, window_bounds = array<i64: 160, 32>}, {pipeline_mode = #tpu.pipeline_mode<synchronous>, transform_indices = @transform_4, window_bounds = array<i64: 160, 1>}, {transform_indices = @transform_5, window_bounds = array<i64: 32, 128>}, {transform_indices = @transform_6, window_bounds = array<i64: 32, 128>}, {transform_indices = @transform_7, window_bounds = array<i64: 32, 128>}]} {
    %c0 = arith.constant 0 : index
    %c0_0 = arith.constant 0 : index
    %0 = vector.load %arg1[%c0, %c0_0] : memref<32x128xf32, #tpu.memory_space<vmem>>, vector<32x128xf32>
    %cst = arith.constant dense<0.000000e+00> : vector<128xf32>
    %1 = vector.multi_reduction <add>, %0, %cst [0] : vector<32x128xf32> to vector<128xf32>
    %2 = vector.shape_cast %1 : vector<128xf32> to vector<1x128xf32>
    %cst_1 = arith.constant 3.200000e+01 : f32
    %3 = vector.broadcast %cst_1 : f32 to vector<1x128xf32>
    %4 = arith.divf %2, %3 : vector<1x128xf32>
    %5 = vector.broadcast %4 : vector<1x128xf32> to vector<32x128xf32>
    %6 = arith.subf %0, %5 : vector<32x128xf32>
    %7 = arith.mulf %6, %6 : vector<32x128xf32>
    %cst_2 = arith.constant dense<0.000000e+00> : vector<128xf32>
    %8 = vector.multi_reduction <add>, %7, %cst_2 [0] : vector<32x128xf32> to vector<128xf32>
    %9 = vector.shape_cast %8 : vector<128xf32> to vector<1x128xf32>
    %cst_3 = arith.constant 3.200000e+01 : f32
    %10 = vector.broadcast %cst_3 : f32 to vector<1x128xf32>
    %11 = arith.divf %9, %10 : vector<1x128xf32>
    %cst_4 = arith.constant 9.99999974E-6 : f32
    %12 = vector.broadcast %cst_4 : f32 to vector<1x128xf32>
    %13 = arith.addf %11, %12 : vector<1x128xf32>
    %14 = math.rsqrt %13 : vector<1x128xf32>
    %15 = vector.broadcast %14 : vector<1x128xf32> to vector<32x128xf32>
    %16 = arith.mulf %6, %15 : vector<32x128xf32>
    %c0_5 = arith.constant 0 : index
    %c0_6 = arith.constant 0 : index
    %17 = vector.load %arg3[%c0_5, %c0_6] : memref<32x2xf32, #tpu.memory_space<vmem>>, vector<32x1xf32>
    %18 = vector.broadcast %17 : vector<32x1xf32> to vector<32x128xf32>
    %19 = arith.mulf %16, %18 : vector<32x128xf32>
    %c0_7 = arith.constant 0 : index
    %c1 = arith.constant 1 : index
    %20 = vector.load %arg3[%c0_7, %c1] : memref<32x2xf32, #tpu.memory_space<vmem>>, vector<32x1xf32>
    %21 = vector.broadcast %20 : vector<32x1xf32> to vector<32x128xf32>
    %22 = arith.addf %19, %21 : vector<32x128xf32>
    %c0_8 = arith.constant 0 : index
    %c0_9 = arith.constant 0 : index
    %23 = vector.load %arg4[%c0_8, %c0_9] : memref<160x32xbf16, #tpu.memory_space<vmem>>, vector<160x32xbf16>
    %24 = arith.truncf %22 : vector<32x128xf32> to vector<32x128xbf16>
    %cst_10 = arith.constant dense<0.000000e+00> : vector<160x128xf32>
    %25 = tpu.matmul %23, %24, %cst_10 {dimension_numbers = #tpu.dot_dimension_numbers<[1], [0], [0], [1], [0, 0, 1, 1], [], []>} : vector<160x32xbf16>, vector<32x128xbf16>, vector<160x128xf32> -> vector<160x128xf32>
    %c0_11 = arith.constant 0 : index
    %c0_12 = arith.constant 0 : index
    %26 = vector.load %arg5[%c0_11, %c0_12] : memref<160x1xf32, #tpu.memory_space<vmem>>, vector<160x1xf32>
    %27 = vector.broadcast %26 : vector<160x1xf32> to vector<160x128xf32>
    %28 = arith.addf %25, %27 : vector<160x128xf32>
    %c0_13 = arith.constant 0 : index
    %c0_14 = arith.constant 0 : index
    %29 = vector.load %arg2[%c0_13, %c0_14] : memref<1x128xf32, #tpu.memory_space<vmem>>, vector<1x128xf32>
    %30 = vector.extract_strided_slice %28 {offsets = [0, 0], sizes = [32, 128], strides = [1, 1]} : vector<160x128xf32> to vector<32x128xf32>
    %31 = vector.broadcast %29 : vector<1x128xf32> to vector<32x128xf32>
    %32 = arith.mulf %31, %30 : vector<32x128xf32>
    %33 = vector.extract_strided_slice %28 {offsets = [64, 0], sizes = [32, 128], strides = [1, 1]} : vector<160x128xf32> to vector<32x128xf32>
    %34 = arith.negf %33 : vector<32x128xf32>
    %35 = math.exp %34 : vector<32x128xf32>
    %cst_15 = arith.constant 1.000000e+00 : f32
    %36 = vector.broadcast %cst_15 : f32 to vector<32x128xf32>
    %37 = arith.addf %36, %35 : vector<32x128xf32>
    %38 = arith.divf %36, %37 : vector<32x128xf32>
    %39 = arith.mulf %32, %38 : vector<32x128xf32>
    %40 = vector.extract_strided_slice %28 {offsets = [32, 0], sizes = [32, 128], strides = [1, 1]} : vector<160x128xf32> to vector<32x128xf32>
    %41 = vector.broadcast %29 : vector<1x128xf32> to vector<32x128xf32>
    %42 = arith.mulf %41, %40 : vector<32x128xf32>
    %43 = vector.extract_strided_slice %28 {offsets = [96, 0], sizes = [32, 128], strides = [1, 1]} : vector<160x128xf32> to vector<32x128xf32>
    %44 = arith.negf %43 : vector<32x128xf32>
    %45 = math.exp %44 : vector<32x128xf32>
    %cst_16 = arith.constant 1.000000e+00 : f32
    %46 = vector.broadcast %cst_16 : f32 to vector<32x128xf32>
    %47 = arith.addf %46, %45 : vector<32x128xf32>
    %48 = arith.divf %46, %47 : vector<32x128xf32>
    %49 = arith.mulf %42, %48 : vector<32x128xf32>
    %50 = vector.extract_strided_slice %28 {offsets = [128, 0], sizes = [32, 128], strides = [1, 1]} : vector<160x128xf32> to vector<32x128xf32>
    %51 = arith.negf %50 : vector<32x128xf32>
    %52 = math.exp %51 : vector<32x128xf32>
    %cst_17 = arith.constant 1.000000e+00 : f32
    %53 = vector.broadcast %cst_17 : f32 to vector<32x128xf32>
    %54 = arith.addf %53, %52 : vector<32x128xf32>
    %55 = arith.divf %53, %54 : vector<32x128xf32>
    %56 = arith.truncf %39 : vector<32x128xf32> to vector<32x128xbf16>
    %c0_18 = arith.constant 0 : index
    %c0_19 = arith.constant 0 : index
    %57 = vector.load %arg6[%c0_18, %c0_19] : memref<32x128xbf16, #tpu.memory_space<vmem>>, vector<32x128xbf16>
    tpu.vector_store %arg6[%c0_18, %c0_19], %56 {strides = array<i32>} : memref<32x128xbf16, #tpu.memory_space<vmem>>, vector<32x128xbf16>,
    %58 = arith.truncf %49 : vector<32x128xf32> to vector<32x128xbf16>
    %c0_20 = arith.constant 0 : index
    %c0_21 = arith.constant 0 : index
    %59 = vector.load %arg7[%c0_20, %c0_21] : memref<32x128xbf16, #tpu.memory_space<vmem>>, vector<32x128xbf16>
    tpu.vector_store %arg7[%c0_20, %c0_21], %58 {strides = array<i32>} : memref<32x128xbf16, #tpu.memory_space<vmem>>, vector<32x128xbf16>,
    %c0_22 = arith.constant 0 : index
    %c0_23 = arith.constant 0 : index
    %60 = vector.load %arg8[%c0_22, %c0_23] : memref<32x128xf32, #tpu.memory_space<vmem>>, vector<32x128xf32>
    tpu.vector_store %arg8[%c0_22, %c0_23], %55 {strides = array<i32>} : memref<32x128xf32, #tpu.memory_space<vmem>>, vector<32x128xf32>,
    return
  }
  func.func @transform_0(%arg0: i32) -> (i32, i32) {
    %c0_i32 = arith.constant 0 : i32
    %c0_i32_0 = arith.constant 0 : i32
    return %c0_i32, %arg0 : i32, i32
  }
  func.func @transform_1(%arg0: i32) -> (i32, i32) {
    %c0_i32 = arith.constant 0 : i32
    %c0_i32_0 = arith.constant 0 : i32
    return %c0_i32, %arg0 : i32, i32
  }
  func.func @transform_2(%arg0: i32) -> (i32, i32) {
    %c0_i32 = arith.constant 0 : i32
    %c0_i32_0 = arith.constant 0 : i32
    %c0_i32_1 = arith.constant 0 : i32
    return %c0_i32, %c0_i32_0 : i32, i32
  }
  func.func @transform_3(%arg0: i32) -> (i32, i32) {
    %c0_i32 = arith.constant 0 : i32
    %c0_i32_0 = arith.constant 0 : i32
    %c0_i32_1 = arith.constant 0 : i32
    return %c0_i32, %c0_i32_0 : i32, i32
  }
  func.func @transform_4(%arg0: i32) -> (i32, i32) {
    %c0_i32 = arith.constant 0 : i32
    %c0_i32_0 = arith.constant 0 : i32
    %c0_i32_1 = arith.constant 0 : i32
    return %c0_i32, %c0_i32_0 : i32, i32
  }
  func.func @transform_5(%arg0: i32) -> (i32, i32) {
    %c0_i32 = arith.constant 0 : i32
    %c0_i32_0 = arith.constant 0 : i32
    return %c0_i32, %arg0 : i32, i32
  }
  func.func @transform_6(%arg0: i32) -> (i32, i32) {
    %c0_i32 = arith.constant 0 : i32
    %c0_i32_0 = arith.constant 0 : i32
    return %c0_i32, %arg0 : i32, i32
  }
  func.func @transform_7(%arg0: i32) -> (i32, i32) {
    %c0_i32 = arith.constant 0 : i32
    %c0_i32_0 = arith.constant 0 : i32
    return %c0_i32, %arg0 : i32, i32
  }
}

module attributes {stable_mosaic.version = 11 : i64} {
  func.func @_triangle_kernel(%arg0: i32, %arg1: memref<16x16x16xbf16, #tpu.memory_space<vmem>>, %arg2: memref<16x16x16xbf16, #tpu.memory_space<vmem>>, %arg3: memref<16x16x16xf32, #tpu.memory_space<vmem>>) attributes {dimension_semantics = [#tpu.dimension_semantics<parallel>], iteration_bounds = array<i64: 2>, scalar_prefetch = 0 : i64, scratch_operands = 0 : i64, tpu.core_type = #tpu.core_type<tc>, window_params = [{transform_indices = @transform_0, window_bounds = array<i64: 16, 16, 16>}, {transform_indices = @transform_1, window_bounds = array<i64: 16, 16, 16>}, {transform_indices = @transform_2, window_bounds = array<i64: 16, 16, 16>}]} {
    %c0 = arith.constant 0 : index
    %c0_0 = arith.constant 0 : index
    %c0_1 = arith.constant 0 : index
    %0 = vector.load %arg1[%c0, %c0_0, %c0_1] : memref<16x16x16xbf16, #tpu.memory_space<vmem>>, vector<16x16x16xbf16>
    %c0_2 = arith.constant 0 : index
    %c0_3 = arith.constant 0 : index
    %c0_4 = arith.constant 0 : index
    %1 = vector.load %arg2[%c0_2, %c0_3, %c0_4] : memref<16x16x16xbf16, #tpu.memory_space<vmem>>, vector<16x16x16xbf16>
    %cst = arith.constant dense<0.000000e+00> : vector<16x16x16xf32>
    %2 = tpu.matmul %0, %1, %cst {dimension_numbers = #tpu.dot_dimension_numbers<[2], [2], [1], [1], [0, 0, 0, 1, 1, 1], [0], [0]>} : vector<16x16x16xbf16>, vector<16x16x16xbf16>, vector<16x16x16xf32> -> vector<16x16x16xf32>
    %c0_5 = arith.constant 0 : index
    %c0_6 = arith.constant 0 : index
    %c0_7 = arith.constant 0 : index
    %3 = vector.load %arg3[%c0_5, %c0_6, %c0_7] : memref<16x16x16xf32, #tpu.memory_space<vmem>>, vector<16x16x16xf32>
    tpu.vector_store %arg3[%c0_5, %c0_6, %c0_7], %2 {strides = array<i32>} : memref<16x16x16xf32, #tpu.memory_space<vmem>>, vector<16x16x16xf32>,
    return
  }
  func.func @transform_0(%arg0: i32) -> (i32, i32, i32) {
    %c0_i32 = arith.constant 0 : i32
    %c0_i32_0 = arith.constant 0 : i32
    %c0_i32_1 = arith.constant 0 : i32
    return %arg0, %c0_i32, %c0_i32_0 : i32, i32, i32
  }
  func.func @transform_1(%arg0: i32) -> (i32, i32, i32) {
    %c0_i32 = arith.constant 0 : i32
    %c0_i32_0 = arith.constant 0 : i32
    %c0_i32_1 = arith.constant 0 : i32
    return %arg0, %c0_i32, %c0_i32_0 : i32, i32, i32
  }
  func.func @transform_2(%arg0: i32) -> (i32, i32, i32) {
    %c0_i32 = arith.constant 0 : i32
    %c0_i32_0 = arith.constant 0 : i32
    %c0_i32_1 = arith.constant 0 : i32
    return %arg0, %c0_i32, %c0_i32_0 : i32, i32, i32
  }
}

module attributes {stable_mosaic.version = 11 : i64} {
  func.func @_out_kernel(%arg0: i32, %arg1: memref<32x128xf32, #tpu.memory_space<vmem>>, %arg2: memref<32x128xf32, #tpu.memory_space<vmem>>, %arg3: memref<32x2xf32, #tpu.memory_space<vmem>>, %arg4: memref<32x32xbf16, #tpu.memory_space<vmem>>, %arg5: memref<32x1xf32, #tpu.memory_space<vmem>>, %arg6: memref<32x128xf32, #tpu.memory_space<vmem>>) attributes {dimension_semantics = [#tpu.dimension_semantics<parallel>], iteration_bounds = array<i64: 2>, scalar_prefetch = 0 : i64, scratch_operands = 0 : i64, tpu.core_type = #tpu.core_type<tc>, window_params = [{transform_indices = @transform_0, window_bounds = array<i64: 32, 128>}, {transform_indices = @transform_1, window_bounds = array<i64: 32, 128>}, {pipeline_mode = #tpu.pipeline_mode<synchronous>, transform_indices = @transform_2, window_bounds = array<i64: 32, 2>}, {pipeline_mode = #tpu.pipeline_mode<synchronous>, transform_indices = @transform_3, window_bounds = array<i64: 32, 32>}, {pipeline_mode = #tpu.pipeline_mode<synchronous>, transform_indices = @transform_4, window_bounds = array<i64: 32, 1>}, {transform_indices = @transform_5, window_bounds = array<i64: 32, 128>}]} {
    %c0 = arith.constant 0 : index
    %c0_0 = arith.constant 0 : index
    %0 = vector.load %arg1[%c0, %c0_0] : memref<32x128xf32, #tpu.memory_space<vmem>>, vector<32x128xf32>
    %cst = arith.constant dense<0.000000e+00> : vector<128xf32>
    %1 = vector.multi_reduction <add>, %0, %cst [0] : vector<32x128xf32> to vector<128xf32>
    %2 = vector.shape_cast %1 : vector<128xf32> to vector<1x128xf32>
    %cst_1 = arith.constant 3.200000e+01 : f32
    %3 = vector.broadcast %cst_1 : f32 to vector<1x128xf32>
    %4 = arith.divf %2, %3 : vector<1x128xf32>
    %5 = vector.broadcast %4 : vector<1x128xf32> to vector<32x128xf32>
    %6 = arith.subf %0, %5 : vector<32x128xf32>
    %7 = arith.mulf %6, %6 : vector<32x128xf32>
    %cst_2 = arith.constant dense<0.000000e+00> : vector<128xf32>
    %8 = vector.multi_reduction <add>, %7, %cst_2 [0] : vector<32x128xf32> to vector<128xf32>
    %9 = vector.shape_cast %8 : vector<128xf32> to vector<1x128xf32>
    %cst_3 = arith.constant 3.200000e+01 : f32
    %10 = vector.broadcast %cst_3 : f32 to vector<1x128xf32>
    %11 = arith.divf %9, %10 : vector<1x128xf32>
    %cst_4 = arith.constant 9.99999974E-6 : f32
    %12 = vector.broadcast %cst_4 : f32 to vector<1x128xf32>
    %13 = arith.addf %11, %12 : vector<1x128xf32>
    %14 = math.rsqrt %13 : vector<1x128xf32>
    %15 = vector.broadcast %14 : vector<1x128xf32> to vector<32x128xf32>
    %16 = arith.mulf %6, %15 : vector<32x128xf32>
    %c0_5 = arith.constant 0 : index
    %c0_6 = arith.constant 0 : index
    %17 = vector.load %arg3[%c0_5, %c0_6] : memref<32x2xf32, #tpu.memory_space<vmem>>, vector<32x1xf32>
    %18 = vector.broadcast %17 : vector<32x1xf32> to vector<32x128xf32>
    %19 = arith.mulf %16, %18 : vector<32x128xf32>
    %c0_7 = arith.constant 0 : index
    %c1 = arith.constant 1 : index
    %20 = vector.load %arg3[%c0_7, %c1] : memref<32x2xf32, #tpu.memory_space<vmem>>, vector<32x1xf32>
    %21 = vector.broadcast %20 : vector<32x1xf32> to vector<32x128xf32>
    %22 = arith.addf %19, %21 : vector<32x128xf32>
    %c0_8 = arith.constant 0 : index
    %c0_9 = arith.constant 0 : index
    %23 = vector.load %arg4[%c0_8, %c0_9] : memref<32x32xbf16, #tpu.memory_space<vmem>>, vector<32x32xbf16>
    %24 = arith.truncf %22 : vector<32x128xf32> to vector<32x128xbf16>
    %cst_10 = arith.constant dense<0.000000e+00> : vector<32x128xf32>
    %25 = tpu.matmul %23, %24, %cst_10 {dimension_numbers = #tpu.dot_dimension_numbers<[1], [0], [0], [1], [0, 0, 1, 1], [], []>} : vector<32x32xbf16>, vector<32x128xbf16>, vector<32x128xf32> -> vector<32x128xf32>
    %c0_11 = arith.constant 0 : index
    %c0_12 = arith.constant 0 : index
    %26 = vector.load %arg5[%c0_11, %c0_12] : memref<32x1xf32, #tpu.memory_space<vmem>>, vector<32x1xf32>
    %27 = vector.broadcast %26 : vector<32x1xf32> to vector<32x128xf32>
    %28 = arith.addf %25, %27 : vector<32x128xf32>
    %c0_13 = arith.constant 0 : index
    %c0_14 = arith.constant 0 : index
    %29 = vector.load %arg2[%c0_13, %c0_14] : memref<32x128xf32, #tpu.memory_space<vmem>>, vector<32x128xf32>
    %30 = arith.mulf %28, %29 : vector<32x128xf32>
    %c0_15 = arith.constant 0 : index
    %c0_16 = arith.constant 0 : index
    %31 = vector.load %arg6[%c0_15, %c0_16] : memref<32x128xf32, #tpu.memory_space<vmem>>, vector<32x128xf32>
    tpu.vector_store %arg6[%c0_15, %c0_16], %30 {strides = array<i32>} : memref<32x128xf32, #tpu.memory_space<vmem>>, vector<32x128xf32>,
    return
  }
  func.func @transform_0(%arg0: i32) -> (i32, i32) {
    %c0_i32 = arith.constant 0 : i32
    %c0_i32_0 = arith.constant 0 : i32
    return %c0_i32, %arg0 : i32, i32
  }
  func.func @transform_1(%arg0: i32) -> (i32, i32) {
    %c0_i32 = arith.constant 0 : i32
    %c0_i32_0 = arith.constant 0 : i32
    return %c0_i32, %arg0 : i32, i32
  }
  func.func @transform_2(%arg0: i32) -> (i32, i32) {
    %c0_i32 = arith.constant 0 : i32
    %c0_i32_0 = arith.constant 0 : i32
    %c0_i32_1 = arith.constant 0 : i32
    return %c0_i32, %c0_i32_0 : i32, i32
  }
  func.func @transform_3(%arg0: i32) -> (i32, i32) {
    %c0_i32 = arith.constant 0 : i32
    %c0_i32_0 = arith.constant 0 : i32
    %c0_i32_1 = arith.constant 0 : i32
    return %c0_i32, %c0_i32_0 : i32, i32
  }
  func.func @transform_4(%arg0: i32) -> (i32, i32) {
    %c0_i32 = arith.constant 0 : i32
    %c0_i32_0 = arith.constant 0 : i32
    %c0_i32_1 = arith.constant 0 : i32
    return %c0_i32, %c0_i32_0 : i32, i32
  }
  func.func @transform_5(%arg0: i32) -> (i32, i32) {
    %c0_i32 = arith.constant 0 : i32
    %c0_i32_0 = arith.constant 0 : i32
    return %c0_i32, %arg0 : i32, i32
  }
}

</mosaic_0001>

<llo_original>
// kernel: triangle_multiplication.4
$region0: #{triangle_multiplication.4}
  #allocation0 [shape = 'u32[]', space=smem, size = 0x4, offset = 0x4, fixed_abs, tag = 'smem constant byte address 0x4 - core index']
  #allocation1 [shape = 'u32[72,128]{1,0:T(1,128)}', space=vmem, size = 0x9000, scoped, tag = 'internal scratch']
  %s0 = inlined_call_operand.vmem [shape: bf16[32,16,16], index: 0, kind: input, shape index: {}]
  %s1 = inlined_call_operand.vmem [shape: bf16[32,16,16], index: 1, kind: input, shape index: {}]
  %s2 = inlined_call_operand.vmem [shape: f32[32,16,16], index: 2, kind: output, shape index: {}]
  %s3 = sld [smem:[#allocation0]]
  $region41: #{triangle_multiplication.4} parent=0
    _
  %s5 = ssub.s32 1, %s3
  %s6 = scalar_select 0, %s5, %s3
  loop: start=0, step=1, limit=4
  $region2: #{triangle_multiplication.4} parent=0 // loop_pre_header
    _
  $region3: #{triangle_multiplication.4} parent=0 // loop_header
    %s8 = sphi 0, %s12
    %p9 = scmp.ge.s32.totalorder %s8, 4
    %s18 = sphi 0, %s20
    %s21 = sphi 0, %s18
    %s22 = sphi 0, %s21
    %s38 = sphi 0, %s22
    %s44 = sphi 0, %s46
    %s47 = sphi 0, %s44
    %s48 = sphi 0, %s47
    %s64 = sphi 0, %s48
    %s70 = sphi 0, %s72
    %s73 = sphi 0, %s70
    %s74 = sphi 0, %s73
    %s90 = sphi 0, %s74
  $region4: #{triangle_multiplication.4} parent=0 // loop_header_branch
    %11 = sbr.rel (%p9) target = $region8
  $region5: #{triangle_multiplication.4} parent=0 // loop_body
    %s13 = ssub.s32 %s8, 1
    %s14 = ssub.s32 %s8, 2
    %s15 = sadd.s32 %s8, 1
    %s16 = ssub.s32 %s8, %s15
    %p17 = scmp.eq.s32.totalorder %s16, 0
    %s19 = sadd.s32 %s18, 1
    %s20 = scalar_select %p17, %s18, %s19
    %p23 = pneg %p17
    %p24 = scmp.eq.s32.totalorder %s8, 1
    %p25 = por %p23, %p24
    %p26 = scmp.ne.s32.totalorder %s18, %s21
    %p27 = scmp.eq.s32.totalorder %s8, 0
    %p28 = por %p26, %p27
    %p29 = scmp.ne.s32.totalorder %s18, %s21
    %p30 = scmp.eq.s32.totalorder %s13, 1
    %p31 = por %p29, %p30
    %p32 = scmp.ne.s32.totalorder %s21, %s22
    %p33 = scmp.eq.s32.totalorder %s13, 0
    %p34 = por %p32, %p33
    %p35 = scmp.ne.s32.totalorder %s21, %s22
    %p36 = scmp.eq.s32.totalorder %s14, 1
    %p37 = por %p35, %p36
    %p39 = scmp.ne.s32.totalorder %s22, %s38
    %p40 = scmp.eq.s32.totalorder %s14, 0
    %p41 = por %p39, %p40
    %s42 = ssub.s32 %s8, %s15
    %p43 = scmp.eq.s32.totalorder %s42, 0
    %s45 = sadd.s32 %s44, 1
    %s46 = scalar_select %p43, %s44, %s45
    %p49 = pneg %p43
    %p50 = scmp.eq.s32.totalorder %s8, 1
    %p51 = por %p49, %p50
    %p52 = scmp.ne.s32.totalorder %s44, %s47
    %p53 = scmp.eq.s32.totalorder %s8, 0
    %p54 = por %p52, %p53
    %p55 = scmp.ne.s32.totalorder %s44, %s47
    %p56 = scmp.eq.s32.totalorder %s13, 1
    %p57 = por %p55, %p56
    %p58 = scmp.ne.s32.totalorder %s47, %s48
    %p59 = scmp.eq.s32.totalorder %s13, 0
    %p60 = por %p58, %p59
    %p61 = scmp.ne.s32.totalorder %s47, %s48
    %p62 = scmp.eq.s32.totalorder %s14, 1
    %p63 = por %p61, %p62
    %p65 = scmp.ne.s32.totalorder %s48, %s64
    %p66 = scmp.eq.s32.totalorder %s14, 0
    %p67 = por %p65, %p66
    %s68 = ssub.s32 %s8, %s15
    %p69 = scmp.eq.s32.totalorder %s68, 0
    %s71 = sadd.s32 %s70, 1
    %s72 = scalar_select %p69, %s70, %s71
    %p75 = pneg %p69
    %p76 = scmp.eq.s32.totalorder %s8, 1
    %p77 = por %p75, %p76
    %p78 = scmp.ne.s32.totalorder %s70, %s73
    %p79 = scmp.eq.s32.totalorder %s8, 0
    %p80 = por %p78, %p79
    %p81 = scmp.ne.s32.totalorder %s70, %s73
    %p82 = scmp.eq.s32.totalorder %s13, 1
    %p83 = por %p81, %p82
    %p84 = scmp.ne.s32.totalorder %s73, %s74
    %p85 = scmp.eq.s32.totalorder %s13, 0
    %p86 = por %p84, %p85
    %p87 = scmp.ne.s32.totalorder %s73, %s74
    %p88 = scmp.eq.s32.totalorder %s14, 1
    %p89 = por %p87, %p88
    %p91 = scmp.ne.s32.totalorder %s74, %s90
    %p92 = scmp.eq.s32.totalorder %s14, 0
    %p93 = por %p91, %p92
    %p94 = scmp.le.s32.totalorder 1, %s8
    %p95 = scmp.lt.s32.totalorder %s8, 3
    %p96 = pnand %p94, %p95
    %p97 = pneg %p96
    // Predicated region
    $region9: #{triangle_multiplication.4} parent=5 // pred_check
      _
    $region10: #{triangle_multiplication.4} parent=5 // pred_check_branch
      %99 = sbr.rel (%p96) target = $region12
    $region11: #{triangle_multiplication.4} parent=5 // pred_region
      %s100 = ssub.s32 %s8, 1
    $region12: #{triangle_multiplication.4} parent=5 // pred_fallthru
      _
    %p101 = scmp.lt.s32.totalorder %s8, 2
    // Predicated region
    $region13: #{triangle_multiplication.4} parent=5 // pred_check
      %p102 = pneg %p101
    $region14: #{triangle_multiplication.4} parent=5 // pred_check_branch
      %104 = sbr.rel (%p102) target = $region16
    $region15: #{triangle_multiplication.4} parent=5 // pred_region
      // Predicated region
      $region17: #{triangle_multiplication.4} parent=15 // pred_check
        %p105 = pneg %p28
      $region18: #{triangle_multiplication.4} parent=15 // pred_check_branch
        %107 = sbr.rel (%p105) target = $region20
      $region19: #{triangle_multiplication.4} parent=15 // pred_region
        %s108 = smul.u32 16, %s8
        %p109 = scmp.lt.s32.totalorder %s108, 31
        %s110 = scalar_select %p109, %s108, 31
        %s111 = smul.addr %s110, 2
        %s112 = smul.addr %s111, 4
        %s113 = scalar_lea.vmem %s0, %s112
        %s114 = smul.u32 16, %s8
      $region20: #{triangle_multiplication.4} parent=15 // pred_fallthru
        _
      // Predicated region
      $region21: #{triangle_multiplication.4} parent=15 // pred_check
        %p115 = pneg %p54
      $region22: #{triangle_multiplication.4} parent=15 // pred_check_branch
        %117 = sbr.rel (%p115) target = $region24
      $region23: #{triangle_multiplication.4} parent=15 // pred_region
        %s118 = smul.u32 16, %s8
        %p119 = scmp.lt.s32.totalorder %s118, 31
        %s120 = scalar_select %p119, %s118, 31
        %s121 = smul.addr %s120, 2
        %s122 = smul.addr %s121, 4
        %s123 = scalar_lea.vmem %s1, %s122
        %s124 = smul.u32 16, %s8
      $region24: #{triangle_multiplication.4} parent=15 // pred_fallthru
        _
    $region16: #{triangle_multiplication.4} parent=5 // pred_fallthru
      _
    %p125 = scmp.le.s32.totalorder 1, %s8
    %p126 = scmp.lt.s32.totalorder %s8, 3
    %p127 = pnand %p125, %p126
    %p128 = pneg %p127
    // Predicated region
    $region25: #{triangle_multiplication.4} parent=5 // pred_check
      _
    $region26: #{triangle_multiplication.4} parent=5 // pred_check_branch
      %130 = sbr.rel (%p127) target = $region28
    $region27: #{triangle_multiplication.4} parent=5 // pred_region
      %s131 = ssub.s32 %s8, 1
      %s132 = smul.u32 16, %s13
      %p133 = scmp.lt.s32.totalorder %s132, 31
      %s134 = scalar_select %p133, %s132, 31
      %s135 = smul.addr %s134, 2
      %s136 = smul.addr %s135, 4
      %s137 = scalar_lea.vmem %s0, %s136
      %p138 = pneg %p34
      %p139 = pneg %p31
      %s140 = smul.u32 16, %s13
      %p141 = scmp.lt.s32.totalorder %s140, 31
      %s142 = scalar_select %p141, %s140, 31
      %s143 = smul.addr %s142, 2
      %s144 = smul.addr %s143, 4
      %s145 = scalar_lea.vmem %s1, %s144
      %p146 = pneg %p60
      %p147 = pneg %p57
      %p148 = pneg %p86
      %p149 = pneg %p83
      %s150 = smul.u32 16, %s13
      %p151 = scmp.lt.s32.totalorder %s150, 31
      %s152 = scalar_select %p151, %s150, 31
      %s153 = smul.addr %s152, 2
      %s154 = smul.addr %s153, 8
      %s155 = scalar_lea.vmem %s2, %s154
      %s156 = smul.u32 16, %s13
      %p157 = scmp.lt.s32.totalorder %s156, 31
      %s158 = scalar_select %p157, %s156, 31
      %s159 = smul.addr %s158, 2
      %s160 = smul.addr %s159, 4
      %s161 = scalar_lea.vmem %s0, %s160
      %s162 = smul.u32 16, %s13
      %s163 = smul.u32 16, %s13
      %p164 = scmp.lt.s32.totalorder %s163, 31
      %s165 = scalar_select %p164, %s163, 31
      %s166 = smul.addr %s165, 2
      %s167 = smul.addr %s166, 4
      %s168 = scalar_lea.vmem %s1, %s167
      %s169 = smul.u32 16, %s13
      %s170 = smul.u32 16, %s13
      %p171 = scmp.lt.s32.totalorder %s170, 31
      %s172 = scalar_select %p171, %s170, 31
      %s173 = smul.addr %s172, 2
      %s174 = smul.addr %s173, 8
      %s175 = scalar_lea.vmem %s2, %s174
      %s176 = smul.u32 16, %s13
      %v178 = vld [vmem:[%s161] sm:$0xf]
      %v179 = vld [vmem:[%s161 + $0x4] sm:$0xf]
      %v180 = vld [vmem:[%s161 + $0x8] sm:$0xf]
      %v181 = vld [vmem:[%s161 + $0xc] sm:$0xf]
      %v182 = vld [vmem:[%s161 + $0x10] sm:$0xf]
      %v183 = vld [vmem:[%s161 + $0x14] sm:$0xf]
      %v184 = vld [vmem:[%s161 + $0x18] sm:$0xf]
      %v185 = vld [vmem:[%s161 + $0x1c] sm:$0xf]
      %v186 = vld [vmem:[%s161 + $0x20] sm:$0xf]
      %v187 = vld [vmem:[%s161 + $0x24] sm:$0xf]
      %v188 = vld [vmem:[%s161 + $0x28] sm:$0xf]
      %v189 = vld [vmem:[%s161 + $0x2c] sm:$0xf]
      %v190 = vld [vmem:[%s161 + $0x30] sm:$0xf]
      %v191 = vld [vmem:[%s161 + $0x34] sm:$0xf]
      %v192 = vld [vmem:[%s161 + $0x38] sm:$0xf]
      %v193 = vld [vmem:[%s161 + $0x3c] sm:$0xf]
      %v194 = vld [vmem:[%s161 + $0x40] sm:$0xf]
      %v195 = vld [vmem:[%s161 + $0x44] sm:$0xf]
      %v196 = vld [vmem:[%s161 + $0x48] sm:$0xf]
      %v197 = vld [vmem:[%s161 + $0x4c] sm:$0xf]
      %v198 = vld [vmem:[%s161 + $0x50] sm:$0xf]
      %v199 = vld [vmem:[%s161 + $0x54] sm:$0xf]
      %v200 = vld [vmem:[%s161 + $0x58] sm:$0xf]
      %v201 = vld [vmem:[%s161 + $0x5c] sm:$0xf]
      %v202 = vld [vmem:[%s161 + $0x60] sm:$0xf]
      %v203 = vld [vmem:[%s161 + $0x64] sm:$0xf]
      %v204 = vld [vmem:[%s161 + $0x68] sm:$0xf]
      %v205 = vld [vmem:[%s161 + $0x6c] sm:$0xf]
      %v206 = vld [vmem:[%s161 + $0x70] sm:$0xf]
      %v207 = vld [vmem:[%s161 + $0x74] sm:$0xf]
      %v208 = vld [vmem:[%s161 + $0x78] sm:$0xf]
      %v209 = vld [vmem:[%s161 + $0x7c] sm:$0xf]
      %v210 = vld [vmem:[%s168] sm:$0xf]
      %v211 = vld [vmem:[%s168 + $0x4] sm:$0xf]
      %v212 = vld [vmem:[%s168 + $0x8] sm:$0xf]
      %v213 = vld [vmem:[%s168 + $0xc] sm:$0xf]
      %v214 = vld [vmem:[%s168 + $0x10] sm:$0xf]
      %v215 = vld [vmem:[%s168 + $0x14] sm:$0xf]
      %v216 = vld [vmem:[%s168 + $0x18] sm:$0xf]
      %v217 = vld [vmem:[%s168 + $0x1c] sm:$0xf]
      %v218 = vld [vmem:[%s168 + $0x20] sm:$0xf]
      %v219 = vld [vmem:[%s168 + $0x24] sm:$0xf]
      %v220 = vld [vmem:[%s168 + $0x28] sm:$0xf]
      %v221 = vld [vmem:[%s168 + $0x2c] sm:$0xf]
      %v222 = vld [vmem:[%s168 + $0x30] sm:$0xf]
      %v223 = vld [vmem:[%s168 + $0x34] sm:$0xf]
      %v224 = vld [vmem:[%s168 + $0x38] sm:$0xf]
      %v225 = vld [vmem:[%s168 + $0x3c] sm:$0xf]
      %v226 = vld [vmem:[%s168 + $0x40] sm:$0xf]
      %v227 = vld [vmem:[%s168 + $0x44] sm:$0xf]
      %v228 = vld [vmem:[%s168 + $0x48] sm:$0xf]
      %v229 = vld [vmem:[%s168 + $0x4c] sm:$0xf]
      %v230 = vld [vmem:[%s168 + $0x50] sm:$0xf]
      %v231 = vld [vmem:[%s168 + $0x54] sm:$0xf]
      %v232 = vld [vmem:[%s168 + $0x58] sm:$0xf]
      %v233 = vld [vmem:[%s168 + $0x5c] sm:$0xf]
      %v234 = vld [vmem:[%s168 + $0x60] sm:$0xf]
      %v235 = vld [vmem:[%s168 + $0x64] sm:$0xf]
      %v236 = vld [vmem:[%s168 + $0x68] sm:$0xf]
      %v237 = vld [vmem:[%s168 + $0x6c] sm:$0xf]
      %v238 = vld [vmem:[%s168 + $0x70] sm:$0xf]
      %v239 = vld [vmem:[%s168 + $0x74] sm:$0xf]
      %v240 = vld [vmem:[%s168 + $0x78] sm:$0xf]
      %v241 = vld [vmem:[%s168 + $0x7c] sm:$0xf]
      %v244 = vunpack.c.l.b16 %v178
      %v245 = vunpack.c.l.b16 %v179
      %v246 = vpack.c.b16 %v245, %v244
      %v249 = vunpack.c.l.b16 %v210
      %v250 = vunpack.c.l.b16 %v211
      %v251 = vpack.c.b16 %v250, %v249
      %vm252 = vcmask 130048
      %v254 = vsel %vm252, %v246, 0
      %v257 = vsel %vm252, %v251, 0
      %259 = vmatpush.bf16.xpose.msra.mxu0 0
      %260 = vmatpush.bf16.xpose.msra.mxu0 0
      %261 = vmatpush.bf16.xpose.msra.mxu0 0
      %262 = vmatpush.bf16.xpose.msra.mxu0 0
      %263 = vmatpush.bf16.xpose.msra.mxu0 0
      %264 = vmatpush.bf16.xpose.msra.mxu0 0
      %265 = vmatpush.bf16.xpose.msra.mxu0 0
      %266 = vmatpush.bf16.xpose.msra.mxu0 %v257
      %267 = vmatmul.bf16.gmra.mxu0 %v254
      %v268 = vpop.f32.mrf.mxu0
      %v269 = vadd.f32 0.0, %v268
      %v270 = vpop.f32.mrf.mxu0
      %v271 = vadd.f32 0.0, %v270
      %272 = vdwg.mxu0
      %v275 = vunpack.c.l.b16 %v180
      %v276 = vunpack.c.l.b16 %v181
      %v277 = vpack.c.b16 %v276, %v275
      %v280 = vunpack.c.l.b16 %v212
      %v281 = vunpack.c.l.b16 %v213
      %v282 = vpack.c.b16 %v281, %v280
      %v284 = vsel %vm252, %v277, 0
      %v287 = vsel %vm252, %v282, 0
      %289 = vmatpush.bf16.xpose.msra.mxu0 0
      %290 = vmatpush.bf16.xpose.msra.mxu0 0
      %291 = vmatpush.bf16.xpose.msra.mxu0 0
      %292 = vmatpush.bf16.xpose.msra.mxu0 0
      %293 = vmatpush.bf16.xpose.msra.mxu0 0
      %294 = vmatpush.bf16.xpose.msra.mxu0 0
      %295 = vmatpush.bf16.xpose.msra.mxu0 0
      %296 = vmatpush.bf16.xpose.msra.mxu0 %v287
      %297 = vmatmul.bf16.gmra.mxu0 %v284
      %v298 = vpop.f32.mrf.mxu0
      %v299 = vadd.f32 0.0, %v298
      %v300 = vpop.f32.mrf.mxu0
      %v301 = vadd.f32 0.0, %v300
      %302 = vdwg.mxu0
      %v305 = vunpack.c.l.b16 %v182
      %v306 = vunpack.c.l.b16 %v183
      %v307 = vpack.c.b16 %v306, %v305
      %v310 = vunpack.c.l.b16 %v214
      %v311 = vunpack.c.l.b16 %v215
      %v312 = vpack.c.b16 %v311, %v310
      %v314 = vsel %vm252, %v307, 0
      %v317 = vsel %vm252, %v312, 0
      %319 = vmatpush.bf16.xpose.msra.mxu0 0
      %320 = vmatpush.bf16.xpose.msra.mxu0 0
      %321 = vmatpush.bf16.xpose.msra.mxu0 0
      %322 = vmatpush.bf16.xpose.msra.mxu0 0
      %323 = vmatpush.bf16.xpose.msra.mxu0 0
      %324 = vmatpush.bf16.xpose.msra.mxu0 0
      %325 = vmatpush.bf16.xpose.msra.mxu0 0
      %326 = vmatpush.bf16.xpose.msra.mxu0 %v317
      %327 = vmatmul.bf16.gmra.mxu0 %v314
      %v328 = vpop.f32.mrf.mxu0
      %v329 = vadd.f32 0.0, %v328
      %v330 = vpop.f32.mrf.mxu0
      %v331 = vadd.f32 0.0, %v330
      %332 = vdwg.mxu0
      %v335 = vunpack.c.l.b16 %v184
      %v336 = vunpack.c.l.b16 %v185
      %v337 = vpack.c.b16 %v336, %v335
      %v340 = vunpack.c.l.b16 %v216
      %v341 = vunpack.c.l.b16 %v217
      %v342 = vpack.c.b16 %v341, %v340
      %v344 = vsel %vm252, %v337, 0
      %v347 = vsel %vm252, %v342, 0
      %349 = vmatpush.bf16.xpose.msra.mxu0 0
      %350 = vmatpush.bf16.xpose.msra.mxu0 0
      %351 = vmatpush.bf16.xpose.msra.mxu0 0
      %352 = vmatpush.bf16.xpose.msra.mxu0 0
      %353 = vmatpush.bf16.xpose.msra.mxu0 0
      %354 = vmatpush.bf16.xpose.msra.mxu0 0
      %355 = vmatpush.bf16.xpose.msra.mxu0 0
      %356 = vmatpush.bf16.xpose.msra.mxu0 %v347
      %357 = vmatmul.bf16.gmra.mxu0 %v344
      %v358 = vpop.f32.mrf.mxu0
      %v359 = vadd.f32 0.0, %v358
      %v360 = vpop.f32.mrf.mxu0
      %v361 = vadd.f32 0.0, %v360
      %362 = vdwg.mxu0
      %v365 = vunpack.c.l.b16 %v186
      %v366 = vunpack.c.l.b16 %v187
      %v367 = vpack.c.b16 %v366, %v365
      %v370 = vunpack.c.l.b16 %v218
      %v371 = vunpack.c.l.b16 %v219
      %v372 = vpack.c.b16 %v371, %v370
      %v374 = vsel %vm252, %v367, 0
      %v377 = vsel %vm252, %v372, 0
      %379 = vmatpush.bf16.xpose.msra.mxu0 0
      %380 = vmatpush.bf16.xpose.msra.mxu0 0
      %381 = vmatpush.bf16.xpose.msra.mxu0 0
      %382 = vmatpush.bf16.xpose.msra.mxu0 0
      %383 = vmatpush.bf16.xpose.msra.mxu0 0
      %384 = vmatpush.bf16.xpose.msra.mxu0 0
      %385 = vmatpush.bf16.xpose.msra.mxu0 0
      %386 = vmatpush.bf16.xpose.msra.mxu0 %v377
      %387 = vmatmul.bf16.gmra.mxu0 %v374
      %v388 = vpop.f32.mrf.mxu0
      %v389 = vadd.f32 0.0, %v388
      %v390 = vpop.f32.mrf.mxu0
      %v391 = vadd.f32 0.0, %v390
      %392 = vdwg.mxu0
      %v395 = vunpack.c.l.b16 %v188
      %v396 = vunpack.c.l.b16 %v189
      %v397 = vpack.c.b16 %v396, %v395
      %v400 = vunpack.c.l.b16 %v220
      %v401 = vunpack.c.l.b16 %v221
      %v402 = vpack.c.b16 %v401, %v400
      %v404 = vsel %vm252, %v397, 0
      %v407 = vsel %vm252, %v402, 0
      %409 = vmatpush.bf16.xpose.msra.mxu0 0
      %410 = vmatpush.bf16.xpose.msra.mxu0 0
      %411 = vmatpush.bf16.xpose.msra.mxu0 0
      %412 = vmatpush.bf16.xpose.msra.mxu0 0
      %413 = vmatpush.bf16.xpose.msra.mxu0 0
      %414 = vmatpush.bf16.xpose.msra.mxu0 0
      %415 = vmatpush.bf16.xpose.msra.mxu0 0
      %416 = vmatpush.bf16.xpose.msra.mxu0 %v407
      %417 = vmatmul.bf16.gmra.mxu0 %v404
      %v418 = vpop.f32.mrf.mxu0
      %v419 = vadd.f32 0.0, %v418
      %v420 = vpop.f32.mrf.mxu0
      %v421 = vadd.f32 0.0, %v420
      %422 = vdwg.mxu0
      %v425 = vunpack.c.l.b16 %v190
      %v426 = vunpack.c.l.b16 %v191
      %v427 = vpack.c.b16 %v426, %v425
      %v430 = vunpack.c.l.b16 %v222
      %v431 = vunpack.c.l.b16 %v223
      %v432 = vpack.c.b16 %v431, %v430
      %v434 = vsel %vm252, %v427, 0
      %v437 = vsel %vm252, %v432, 0
      %439 = vmatpush.bf16.xpose.msra.mxu0 0
      %440 = vmatpush.bf16.xpose.msra.mxu0 0
      %441 = vmatpush.bf16.xpose.msra.mxu0 0
      %442 = vmatpush.bf16.xpose.msra.mxu0 0
      %443 = vmatpush.bf16.xpose.msra.mxu0 0
      %444 = vmatpush.bf16.xpose.msra.mxu0 0
      %445 = vmatpush.bf16.xpose.msra.mxu0 0
      %446 = vmatpush.bf16.xpose.msra.mxu0 %v437
      %447 = vmatmul.bf16.gmra.mxu0 %v434
      %v448 = vpop.f32.mrf.mxu0
      %v449 = vadd.f32 0.0, %v448
      %v450 = vpop.f32.mrf.mxu0
      %v451 = vadd.f32 0.0, %v450
      %452 = vdwg.mxu0
      %v455 = vunpack.c.l.b16 %v192
      %v456 = vunpack.c.l.b16 %v193
      %v457 = vpack.c.b16 %v456, %v455
      %v460 = vunpack.c.l.b16 %v224
      %v461 = vunpack.c.l.b16 %v225
      %v462 = vpack.c.b16 %v461, %v460
      %v464 = vsel %vm252, %v457, 0
      %v467 = vsel %vm252, %v462, 0
      %469 = vmatpush.bf16.xpose.msra.mxu0 0
      %470 = vmatpush.bf16.xpose.msra.mxu0 0
      %471 = vmatpush.bf16.xpose.msra.mxu0 0
      %472 = vmatpush.bf16.xpose.msra.mxu0 0
      %473 = vmatpush.bf16.xpose.msra.mxu0 0
      %474 = vmatpush.bf16.xpose.msra.mxu0 0
      %475 = vmatpush.bf16.xpose.msra.mxu0 0
      %476 = vmatpush.bf16.xpose.msra.mxu0 %v467
      %477 = vmatmul.bf16.gmra.mxu0 %v464
      %v478 = vpop.f32.mrf.mxu0
      %v479 = vadd.f32 0.0, %v478
      %v480 = vpop.f32.mrf.mxu0
      %v481 = vadd.f32 0.0, %v480
      %482 = vdwg.mxu0
      %v485 = vunpack.c.l.b16 %v194
      %v486 = vunpack.c.l.b16 %v195
      %v487 = vpack.c.b16 %v486, %v485
      %v490 = vunpack.c.l.b16 %v226
      %v491 = vunpack.c.l.b16 %v227
      %v492 = vpack.c.b16 %v491, %v490
      %v494 = vsel %vm252, %v487, 0
      %v497 = vsel %vm252, %v492, 0
      %499 = vmatpush.bf16.xpose.msra.mxu0 0
      %500 = vmatpush.bf16.xpose.msra.mxu0 0
      %501 = vmatpush.bf16.xpose.msra.mxu0 0
      %502 = vmatpush.bf16.xpose.msra.mxu0 0
      %503 = vmatpush.bf16.xpose.msra.mxu0 0
      %504 = vmatpush.bf16.xpose.msra.mxu0 0
      %505 = vmatpush.bf16.xpose.msra.mxu0 0
      %506 = vmatpush.bf16.xpose.msra.mxu0 %v497
      %507 = vmatmul.bf16.gmra.mxu0 %v494
      %v508 = vpop.f32.mrf.mxu0
      %v509 = vadd.f32 0.0, %v508
      %v510 = vpop.f32.mrf.mxu0
      %v511 = vadd.f32 0.0, %v510
      %512 = vdwg.mxu0
      %v515 = vunpack.c.l.b16 %v196
      %v516 = vunpack.c.l.b16 %v197
      %v517 = vpack.c.b16 %v516, %v515
      %v520 = vunpack.c.l.b16 %v228
      %v521 = vunpack.c.l.b16 %v229
      %v522 = vpack.c.b16 %v521, %v520
      %v524 = vsel %vm252, %v517, 0
      %v527 = vsel %vm252, %v522, 0
      %529 = vmatpush.bf16.xpose.msra.mxu0 0
      %530 = vmatpush.bf16.xpose.msra.mxu0 0
      %531 = vmatpush.bf16.xpose.msra.mxu0 0
      %532 = vmatpush.bf16.xpose.msra.mxu0 0
      %533 = vmatpush.bf16.xpose.msra.mxu0 0
      %534 = vmatpush.bf16.xpose.msra.mxu0 0
      %535 = vmatpush.bf16.xpose.msra.mxu0 0
      %536 = vmatpush.bf16.xpose.msra.mxu0 %v527
      %537 = vmatmul.bf16.gmra.mxu0 %v524
      %v538 = vpop.f32.mrf.mxu0
      %v539 = vadd.f32 0.0, %v538
      %v540 = vpop.f32.mrf.mxu0
      %v541 = vadd.f32 0.0, %v540
      %542 = vdwg.mxu0
      %v545 = vunpack.c.l.b16 %v198
      %v546 = vunpack.c.l.b16 %v199
      %v547 = vpack.c.b16 %v546, %v545
      %v550 = vunpack.c.l.b16 %v230
      %v551 = vunpack.c.l.b16 %v231
      %v552 = vpack.c.b16 %v551, %v550
      %v554 = vsel %vm252, %v547, 0
      %v557 = vsel %vm252, %v552, 0
      %559 = vmatpush.bf16.xpose.msra.mxu0 0
      %560 = vmatpush.bf16.xpose.msra.mxu0 0
      %561 = vmatpush.bf16.xpose.msra.mxu0 0
      %562 = vmatpush.bf16.xpose.msra.mxu0 0
      %563 = vmatpush.bf16.xpose.msra.mxu0 0
      %564 = vmatpush.bf16.xpose.msra.mxu0 0
      %565 = vmatpush.bf16.xpose.msra.mxu0 0
      %566 = vmatpush.bf16.xpose.msra.mxu0 %v557
      %567 = vmatmul.bf16.gmra.mxu0 %v554
      %v568 = vpop.f32.mrf.mxu0
      %v569 = vadd.f32 0.0, %v568
      %v570 = vpop.f32.mrf.mxu0
      %v571 = vadd.f32 0.0, %v570
      %572 = vdwg.mxu0
      %v575 = vunpack.c.l.b16 %v200
      %v576 = vunpack.c.l.b16 %v201
      %v577 = vpack.c.b16 %v576, %v575
      %v580 = vunpack.c.l.b16 %v232
      %v581 = vunpack.c.l.b16 %v233
      %v582 = vpack.c.b16 %v581, %v580
      %v584 = vsel %vm252, %v577, 0
      %v587 = vsel %vm252, %v582, 0
      %589 = vmatpush.bf16.xpose.msra.mxu0 0
      %590 = vmatpush.bf16.xpose.msra.mxu0 0
      %591 = vmatpush.bf16.xpose.msra.mxu0 0
      %592 = vmatpush.bf16.xpose.msra.mxu0 0
      %593 = vmatpush.bf16.xpose.msra.mxu0 0
      %594 = vmatpush.bf16.xpose.msra.mxu0 0
      %595 = vmatpush.bf16.xpose.msra.mxu0 0
      %596 = vmatpush.bf16.xpose.msra.mxu0 %v587
      %597 = vmatmul.bf16.gmra.mxu0 %v584
      %v598 = vpop.f32.mrf.mxu0
      %v599 = vadd.f32 0.0, %v598
      %v600 = vpop.f32.mrf.mxu0
      %v601 = vadd.f32 0.0, %v600
      %602 = vdwg.mxu0
      %v605 = vunpack.c.l.b16 %v202
      %v606 = vunpack.c.l.b16 %v203
      %v607 = vpack.c.b16 %v606, %v605
      %v610 = vunpack.c.l.b16 %v234
      %v611 = vunpack.c.l.b16 %v235
      %v612 = vpack.c.b16 %v611, %v610
      %v614 = vsel %vm252, %v607, 0
      %v617 = vsel %vm252, %v612, 0
      %619 = vmatpush.bf16.xpose.msra.mxu0 0
      %620 = vmatpush.bf16.xpose.msra.mxu0 0
      %621 = vmatpush.bf16.xpose.msra.mxu0 0
      %622 = vmatpush.bf16.xpose.msra.mxu0 0
      %623 = vmatpush.bf16.xpose.msra.mxu0 0
      %624 = vmatpush.bf16.xpose.msra.mxu0 0
      %625 = vmatpush.bf16.xpose.msra.mxu0 0
      %626 = vmatpush.bf16.xpose.msra.mxu0 %v617
      %627 = vmatmul.bf16.gmra.mxu0 %v614
      %v628 = vpop.f32.mrf.mxu0
      %v629 = vadd.f32 0.0, %v628
      %v630 = vpop.f32.mrf.mxu0
      %v631 = vadd.f32 0.0, %v630
      %632 = vdwg.mxu0
      %v635 = vunpack.c.l.b16 %v204
      %v636 = vunpack.c.l.b16 %v205
      %v637 = vpack.c.b16 %v636, %v635
      %v640 = vunpack.c.l.b16 %v236
      %v641 = vunpack.c.l.b16 %v237
      %v642 = vpack.c.b16 %v641, %v640
      %v644 = vsel %vm252, %v637, 0
      %v647 = vsel %vm252, %v642, 0
      %649 = vmatpush.bf16.xpose.msra.mxu0 0
      %650 = vmatpush.bf16.xpose.msra.mxu0 0
      %651 = vmatpush.bf16.xpose.msra.mxu0 0
      %652 = vmatpush.bf16.xpose.msra.mxu0 0
      %653 = vmatpush.bf16.xpose.msra.mxu0 0
      %654 = vmatpush.bf16.xpose.msra.mxu0 0
      %655 = vmatpush.bf16.xpose.msra.mxu0 0
      %656 = vmatpush.bf16.xpose.msra.mxu0 %v647
      %657 = vmatmul.bf16.gmra.mxu0 %v644
      %v658 = vpop.f32.mrf.mxu0
      %v659 = vadd.f32 0.0, %v658
      %v660 = vpop.f32.mrf.mxu0
      %v661 = vadd.f32 0.0, %v660
      %662 = vdwg.mxu0
      %v665 = vunpack.c.l.b16 %v206
      %v666 = vunpack.c.l.b16 %v207
      %v667 = vpack.c.b16 %v666, %v665
      %v670 = vunpack.c.l.b16 %v238
      %v671 = vunpack.c.l.b16 %v239
      %v672 = vpack.c.b16 %v671, %v670
      %v674 = vsel %vm252, %v667, 0
      %v677 = vsel %vm252, %v672, 0
      %679 = vmatpush.bf16.xpose.msra.mxu0 0
      %680 = vmatpush.bf16.xpose.msra.mxu0 0
      %681 = vmatpush.bf16.xpose.msra.mxu0 0
      %682 = vmatpush.bf16.xpose.msra.mxu0 0
      %683 = vmatpush.bf16.xpose.msra.mxu0 0
      %684 = vmatpush.bf16.xpose.msra.mxu0 0
      %685 = vmatpush.bf16.xpose.msra.mxu0 0
      %686 = vmatpush.bf16.xpose.msra.mxu0 %v677
      %687 = vmatmul.bf16.gmra.mxu0 %v674
      %v688 = vpop.f32.mrf.mxu0
      %v689 = vadd.f32 0.0, %v688
      %v690 = vpop.f32.mrf.mxu0
      %v691 = vadd.f32 0.0, %v690
      %692 = vdwg.mxu0
      %v695 = vunpack.c.l.b16 %v208
      %v696 = vunpack.c.l.b16 %v209
      %v697 = vpack.c.b16 %v696, %v695
      %v700 = vunpack.c.l.b16 %v240
      %v701 = vunpack.c.l.b16 %v241
      %v702 = vpack.c.b16 %v701, %v700
      %v704 = vsel %vm252, %v697, 0
      %v707 = vsel %vm252, %v702, 0
      %709 = vmatpush.bf16.xpose.msra.mxu0 0
      %710 = vmatpush.bf16.xpose.msra.mxu0 0
      %711 = vmatpush.bf16.xpose.msra.mxu0 0
      %712 = vmatpush.bf16.xpose.msra.mxu0 0
      %713 = vmatpush.bf16.xpose.msra.mxu0 0
      %714 = vmatpush.bf16.xpose.msra.mxu0 0
      %715 = vmatpush.bf16.xpose.msra.mxu0 0
      %716 = vmatpush.bf16.xpose.msra.mxu0 %v707
      %717 = vmatmul.bf16.gmra.mxu0 %v704
      %v718 = vpop.f32.mrf.mxu0
      %v719 = vadd.f32 0.0, %v718
      %v720 = vpop.f32.mrf.mxu0
      %v721 = vadd.f32 0.0, %v720
      %722 = vdwg.mxu0
      %723 = vst.msk [vmem:[%s175] sm:$0xff] %vm252, %v269
      %724 = vst.msk [vmem:[%s175 + $0x8] sm:$0xff] %vm252, %v271
      %725 = vst.msk [vmem:[%s175 + $0x10] sm:$0xff] %vm252, %v299
      %726 = vst.msk [vmem:[%s175 + $0x18] sm:$0xff] %vm252, %v301
      %727 = vst.msk [vmem:[%s175 + $0x20] sm:$0xff] %vm252, %v329
      %728 = vst.msk [vmem:[%s175 + $0x28] sm:$0xff] %vm252, %v331
      %729 = vst.msk [vmem:[%s175 + $0x30] sm:$0xff] %vm252, %v359
      %730 = vst.msk [vmem:[%s175 + $0x38] sm:$0xff] %vm252, %v361
      %731 = vst.msk [vmem:[%s175 + $0x40] sm:$0xff] %vm252, %v389
      %732 = vst.msk [vmem:[%s175 + $0x48] sm:$0xff] %vm252, %v391
      %733 = vst.msk [vmem:[%s175 + $0x50] sm:$0xff] %vm252, %v419
      %734 = vst.msk [vmem:[%s175 + $0x58] sm:$0xff] %vm252, %v421
      %735 = vst.msk [vmem:[%s175 + $0x60] sm:$0xff] %vm252, %v449
      %736 = vst.msk [vmem:[%s175 + $0x68] sm:$0xff] %vm252, %v451
      %737 = vst.msk [vmem:[%s175 + $0x70] sm:$0xff] %vm252, %v479
      %738 = vst.msk [vmem:[%s175 + $0x78] sm:$0xff] %vm252, %v481
      %739 = vst.msk [vmem:[%s175 + $0x80] sm:$0xff] %vm252, %v509
      %740 = vst.msk [vmem:[%s175 + $0x88] sm:$0xff] %vm252, %v511
      %741 = vst.msk [vmem:[%s175 + $0x90] sm:$0xff] %vm252, %v539
      %742 = vst.msk [vmem:[%s175 + $0x98] sm:$0xff] %vm252, %v541
      %743 = vst.msk [vmem:[%s175 + $0xa0] sm:$0xff] %vm252, %v569
      %744 = vst.msk [vmem:[%s175 + $0xa8] sm:$0xff] %vm252, %v571
      %745 = vst.msk [vmem:[%s175 + $0xb0] sm:$0xff] %vm252, %v599
      %746 = vst.msk [vmem:[%s175 + $0xb8] sm:$0xff] %vm252, %v601
      %747 = vst.msk [vmem:[%s175 + $0xc0] sm:$0xff] %vm252, %v629
      %748 = vst.msk [vmem:[%s175 + $0xc8] sm:$0xff] %vm252, %v631
      %749 = vst.msk [vmem:[%s175 + $0xd0] sm:$0xff] %vm252, %v659
      %750 = vst.msk [vmem:[%s175 + $0xd8] sm:$0xff] %vm252, %v661
      %751 = vst.msk [vmem:[%s175 + $0xe0] sm:$0xff] %vm252, %v689
      %752 = vst.msk [vmem:[%s175 + $0xe8] sm:$0xff] %vm252, %v691
      %753 = vst.msk [vmem:[%s175 + $0xf0] sm:$0xff] %vm252, %v719
      %754 = vst.msk [vmem:[%s175 + $0xf8] sm:$0xff] %vm252, %v721
      %s755 = smul.u32 16, %s13
      %p756 = scmp.lt.s32.totalorder %s755, 31
      %s757 = scalar_select %p756, %s755, 31
      %s758 = smul.addr %s757, 2
      %s759 = smul.addr %s758, 8
      %s760 = scalar_lea.vmem %s2, %s759
      // Predicated region
      $region29: #{triangle_multiplication.4} parent=27 // pred_check
        %p761 = pneg %p83
      $region30: #{triangle_multiplication.4} parent=27 // pred_check_branch
        %763 = sbr.rel (%p761) target = $region32
      $region31: #{triangle_multiplication.4} parent=27 // pred_region
        %s764 = smul.u32 16, %s13
      $region32: #{triangle_multiplication.4} parent=27 // pred_fallthru
        _
    $region28: #{triangle_multiplication.4} parent=5 // pred_fallthru
      _
    %p765 = scmp.le.s32.totalorder 2, %s8
    // Predicated region
    $region33: #{triangle_multiplication.4} parent=5 // pred_check
      %p766 = pneg %p765
    $region34: #{triangle_multiplication.4} parent=5 // pred_check_branch
      %768 = sbr.rel (%p766) target = $region36
    $region35: #{triangle_multiplication.4} parent=5 // pred_region
      %s769 = ssub.s32 %s8, 2
      // Predicated region
      $region37: #{triangle_multiplication.4} parent=35 // pred_check
        %p770 = pneg %p89
      $region38: #{triangle_multiplication.4} parent=35 // pred_check_branch
        %772 = sbr.rel (%p770) target = $region40
      $region39: #{triangle_multiplication.4} parent=35 // pred_region
        %s773 = smul.u32 16, %s14
        %p774 = scmp.lt.s32.totalorder %s773, 31
        %s775 = scalar_select %p774, %s773, 31
        %s776 = smul.addr %s775, 2
        %s777 = smul.addr %s776, 8
        %s778 = scalar_lea.vmem %s2, %s777
      $region40: #{triangle_multiplication.4} parent=35 // pred_fallthru
        _
    $region36: #{triangle_multiplication.4} parent=5 // pred_fallthru
      _
  $region6: #{triangle_multiplication.4} parent=0 // loop_footer
    %s12 = sadd.s32 1, %s8
  $region7: #{triangle_multiplication.4} parent=0 // loop_footer_branch
    %7 = sbr.rel target = $region3
  $region8: #{triangle_multiplication.4} parent=0 // loop_exit
    _

// kernel: triangle_multiplication.3
$region0: #{triangle_multiplication.3}
  #allocation0 [shape = 'u32[]', space=smem, size = 0x4, offset = 0x4, fixed_abs, tag = 'smem constant byte address 0x4 - core index']
  #allocation1 [shape = 'u32[72,128]{1,0:T(1,128)}', space=vmem, size = 0x9000, scoped, tag = 'internal scratch']
  %s0 = inlined_call_operand.vmem [shape: f32[32,256], index: 0, kind: input, shape index: {}]
  %s1 = inlined_call_operand.vmem [shape: f32[1,256], index: 1, kind: input, shape index: {}]
  %s2 = inlined_call_operand.vmem [shape: f32[32,2], index: 2, kind: input, shape index: {}]
  %s3 = inlined_call_operand.vmem [shape: bf16[160,32], index: 3, kind: input, shape index: {}]
  %s4 = inlined_call_operand.vmem [shape: f32[160,1], index: 4, kind: input, shape index: {}]
  %s5 = inlined_call_operand.vmem [shape: bf16[32,256], index: 5, kind: output, shape index: {0}]
  %s6 = inlined_call_operand.vmem [shape: bf16[32,256], index: 6, kind: output, shape index: {1}]
  %s7 = inlined_call_operand.vmem [shape: f32[32,256], index: 7, kind: output, shape index: {2}]
  %8 = xla_tuple %s5, %s6, %s7
  %s9 = sld [smem:[#allocation0]]
  $region215: #{triangle_multiplication.3} parent=0
    _
  %s11 = ssub.s32 1, %s9
  %s12 = scalar_select 0, %s11, %s9
  $region1: #{triangle_multiplication.3} parent=0
    #allocation2 [shape = 'u8[32768]{0}', space=vmem, size = 0x8000, scoped, tag = 'input window, operand 0']
    #allocation3 [shape = 'u8[16384]{0}', space=vmem, size = 0x4000, scoped, tag = 'output window, operand 0']
    #allocation4 [shape = 'u8[16384]{0}', space=vmem, size = 0x4000, scoped, tag = 'output window, operand 1']
    #allocation5 [shape = 'u8[32768]{0}', space=vmem, size = 0x8000, scoped, tag = 'output window, operand 2']
    loop: start=0, step=1, limit=4
    $region2: #{triangle_multiplication.3} parent=1 // loop_pre_header
      _
    $region3: #{triangle_multiplication.3} parent=1 // loop_header
      %s14 = sphi 0, %s18
      %p15 = scmp.ge.s32.totalorder %s14, 4
      %s24 = sphi 0, %s26
      %s27 = sphi 0, %s24
      %s28 = sphi 0, %s27
      %s44 = sphi 0, %s28
      %s50 = sphi 0, %s52
      %s53 = sphi 0, %s50
      %s54 = sphi 0, %s53
      %s70 = sphi 0, %s54
      %s74 = sphi 0, %s74
      %s76 = sphi 0, %s74
      %s77 = sphi 0, %s76
      %s91 = sphi 0, %s77
      %s95 = sphi 0, %s95
      %s97 = sphi 0, %s95
      %s98 = sphi 0, %s97
      %s112 = sphi 0, %s98
      %s116 = sphi 0, %s116
      %s118 = sphi 0, %s116
      %s119 = sphi 0, %s118
      %s133 = sphi 0, %s119
      %s139 = sphi 0, %s141
      %s142 = sphi 0, %s139
      %s143 = sphi 0, %s142
      %s159 = sphi 0, %s143
      %s165 = sphi 0, %s167
      %s168 = sphi 0, %s165
      %s169 = sphi 0, %s168
      %s185 = sphi 0, %s169
      %s191 = sphi 0, %s193
      %s194 = sphi 0, %s191
      %s195 = sphi 0, %s194
      %s211 = sphi 0, %s195
    $region4: #{triangle_multiplication.3} parent=1 // loop_header_branch
      %17 = sbr.rel (%p15) target = $region8
    $region5: #{triangle_multiplication.3} parent=1 // loop_body
      %s19 = ssub.s32 %s14, 1
      %s20 = ssub.s32 %s14, 2
      %s21 = sadd.s32 %s14, 1
      %s22 = ssub.s32 %s14, %s21
      %p23 = scmp.eq.s32.totalorder %s22, 0
      %s25 = sadd.s32 %s24, 1
      %s26 = scalar_select %p23, %s24, %s25
      %p29 = pneg %p23
      %p30 = scmp.eq.s32.totalorder %s14, 1
      %p31 = por %p29, %p30
      %p32 = scmp.ne.s32.totalorder %s24, %s27
      %p33 = scmp.eq.s32.totalorder %s14, 0
      %p34 = por %p32, %p33
      %p35 = scmp.ne.s32.totalorder %s24, %s27
      %p36 = scmp.eq.s32.totalorder %s19, 1
      %p37 = por %p35, %p36
      %p38 = scmp.ne.s32.totalorder %s27, %s28
      %p39 = scmp.eq.s32.totalorder %s19, 0
      %p40 = por %p38, %p39
      %p41 = scmp.ne.s32.totalorder %s27, %s28
      %p42 = scmp.eq.s32.totalorder %s20, 1
      %p43 = por %p41, %p42
      %p45 = scmp.ne.s32.totalorder %s28, %s44
      %p46 = scmp.eq.s32.totalorder %s20, 0
      %p47 = por %p45, %p46
      %s48 = ssub.s32 %s14, %s21
      %p49 = scmp.eq.s32.totalorder %s48, 0
      %s51 = sadd.s32 %s50, 1
      %s52 = scalar_select %p49, %s50, %s51
      %p55 = pneg %p49
      %p56 = scmp.eq.s32.totalorder %s14, 1
      %p57 = por %p55, %p56
      %p58 = scmp.ne.s32.totalorder %s50, %s53
      %p59 = scmp.eq.s32.totalorder %s14, 0
      %p60 = por %p58, %p59
      %p61 = scmp.ne.s32.totalorder %s50, %s53
      %p62 = scmp.eq.s32.totalorder %s19, 1
      %p63 = por %p61, %p62
      %p64 = scmp.ne.s32.totalorder %s53, %s54
      %p65 = scmp.eq.s32.totalorder %s19, 0
      %p66 = por %p64, %p65
      %p67 = scmp.ne.s32.totalorder %s53, %s54
      %p68 = scmp.eq.s32.totalorder %s20, 1
      %p69 = por %p67, %p68
      %p71 = scmp.ne.s32.totalorder %s54, %s70
      %p72 = scmp.eq.s32.totalorder %s20, 0
      %p73 = por %p71, %p72
      %s75 = sadd.s32 %s74, 1
      %p78 = scmp.eq.s32.totalorder %s14, 1
      %p79 = scmp.ne.s32.totalorder %s74, %s76
      %p80 = scmp.eq.s32.totalorder %s14, 0
      %p81 = por %p79, %p80
      %p82 = scmp.ne.s32.totalorder %s74, %s76
      %p83 = scmp.eq.s32.totalorder %s19, 1
      %p84 = por %p82, %p83
      %p85 = scmp.ne.s32.totalorder %s76, %s77
      %p86 = scmp.eq.s32.totalorder %s19, 0
      %p87 = por %p85, %p86
      %p88 = scmp.ne.s32.totalorder %s76, %s77
      %p89 = scmp.eq.s32.totalorder %s20, 1
      %p90 = por %p88, %p89
      %p92 = scmp.ne.s32.totalorder %s77, %s91
      %p93 = scmp.eq.s32.totalorder %s20, 0
      %p94 = por %p92, %p93
      %s96 = sadd.s32 %s95, 1
      %p99 = scmp.eq.s32.totalorder %s14, 1
      %p100 = scmp.ne.s32.totalorder %s95, %s97
      %p101 = scmp.eq.s32.totalorder %s14, 0
      %p102 = por %p100, %p101
      %p103 = scmp.ne.s32.totalorder %s95, %s97
      %p104 = scmp.eq.s32.totalorder %s19, 1
      %p105 = por %p103, %p104
      %p106 = scmp.ne.s32.totalorder %s97, %s98
      %p107 = scmp.eq.s32.totalorder %s19, 0
      %p108 = por %p106, %p107
      %p109 = scmp.ne.s32.totalorder %s97, %s98
      %p110 = scmp.eq.s32.totalorder %s20, 1
      %p111 = por %p109, %p110
      %p113 = scmp.ne.s32.totalorder %s98, %s112
      %p114 = scmp.eq.s32.totalorder %s20, 0
      %p115 = por %p113, %p114
      %s117 = sadd.s32 %s116, 1
      %p120 = scmp.eq.s32.totalorder %s14, 1
      %p121 = scmp.ne.s32.totalorder %s116, %s118
      %p122 = scmp.eq.s32.totalorder %s14, 0
      %p123 = por %p121, %p122
      %p124 = scmp.ne.s32.totalorder %s116, %s118
      %p125 = scmp.eq.s32.totalorder %s19, 1
      %p126 = por %p124, %p125
      %p127 = scmp.ne.s32.totalorder %s118, %s119
      %p128 = scmp.eq.s32.totalorder %s19, 0
      %p129 = por %p127, %p128
      %p130 = scmp.ne.s32.totalorder %s118, %s119
      %p131 = scmp.eq.s32.totalorder %s20, 1
      %p132 = por %p130, %p131
      %p134 = scmp.ne.s32.totalorder %s119, %s133
      %p135 = scmp.eq.s32.totalorder %s20, 0
      %p136 = por %p134, %p135
      %s137 = ssub.s32 %s14, %s21
      %p138 = scmp.eq.s32.totalorder %s137, 0
      %s140 = sadd.s32 %s139, 1
      %s141 = scalar_select %p138, %s139, %s140
      %p144 = pneg %p138
      %p145 = scmp.eq.s32.totalorder %s14, 1
      %p146 = por %p144, %p145
      %p147 = scmp.ne.s32.totalorder %s139, %s142
      %p148 = scmp.eq.s32.totalorder %s14, 0
      %p149 = por %p147, %p148
      %p150 = scmp.ne.s32.totalorder %s139, %s142
      %p151 = scmp.eq.s32.totalorder %s19, 1
      %p152 = por %p150, %p151
      %p153 = scmp.ne.s32.totalorder %s142, %s143
      %p154 = scmp.eq.s32.totalorder %s19, 0
      %p155 = por %p153, %p154
      %p156 = scmp.ne.s32.totalorder %s142, %s143
      %p157 = scmp.eq.s32.totalorder %s20, 1
      %p158 = por %p156, %p157
      %p160 = scmp.ne.s32.totalorder %s143, %s159
      %p161 = scmp.eq.s32.totalorder %s20, 0
      %p162 = por %p160, %p161
      %s163 = ssub.s32 %s14, %s21
      %p164 = scmp.eq.s32.totalorder %s163, 0
      %s166 = sadd.s32 %s165, 1
      %s167 = scalar_select %p164, %s165, %s166
      %p170 = pneg %p164
      %p171 = scmp.eq.s32.totalorder %s14, 1
      %p172 = por %p170, %p171
      %p173 = scmp.ne.s32.totalorder %s165, %s168
      %p174 = scmp.eq.s32.totalorder %s14, 0
      %p175 = por %p173, %p174
      %p176 = scmp.ne.s32.totalorder %s165, %s168
      %p177 = scmp.eq.s32.totalorder %s19, 1
      %p178 = por %p176, %p177
      %p179 = scmp.ne.s32.totalorder %s168, %s169
      %p180 = scmp.eq.s32.totalorder %s19, 0
      %p181 = por %p179, %p180
      %p182 = scmp.ne.s32.totalorder %s168, %s169
      %p183 = scmp.eq.s32.totalorder %s20, 1
      %p184 = por %p182, %p183
      %p186 = scmp.ne.s32.totalorder %s169, %s185
      %p187 = scmp.eq.s32.totalorder %s20, 0
      %p188 = por %p186, %p187
      %s189 = ssub.s32 %s14, %s21
      %p190 = scmp.eq.s32.totalorder %s189, 0
      %s192 = sadd.s32 %s191, 1
      %s193 = scalar_select %p190, %s191, %s192
      %p196 = pneg %p190
      %p197 = scmp.eq.s32.totalorder %s14, 1
      %p198 = por %p196, %p197
      %p199 = scmp.ne.s32.totalorder %s191, %s194
      %p200 = scmp.eq.s32.totalorder %s14, 0
      %p201 = por %p199, %p200
      %p202 = scmp.ne.s32.totalorder %s191, %s194
      %p203 = scmp.eq.s32.totalorder %s19, 1
      %p204 = por %p202, %p203
      %p205 = scmp.ne.s32.totalorder %s194, %s195
      %p206 = scmp.eq.s32.totalorder %s19, 0
      %p207 = por %p205, %p206
      %p208 = scmp.ne.s32.totalorder %s194, %s195
      %p209 = scmp.eq.s32.totalorder %s20, 1
      %p210 = por %p208, %p209
      %p212 = scmp.ne.s32.totalorder %s195, %s211
      %p213 = scmp.eq.s32.totalorder %s20, 0
      %p214 = por %p212, %p213
      %p215 = scmp.le.s32.totalorder 1, %s14
      %p216 = scmp.lt.s32.totalorder %s14, 3
      %p217 = pnand %p215, %p216
      %p218 = pneg %p217
      // Predicated region
      $region9: #{triangle_multiplication.3} parent=5 // pred_check
        _
      $region10: #{triangle_multiplication.3} parent=5 // pred_check_branch
        %220 = sbr.rel (%p217) target = $region12
      $region11: #{triangle_multiplication.3} parent=5 // pred_region
        %s221 = ssub.s32 %s14, 1
        // Predicated region
        $region13: #{triangle_multiplication.3} parent=11 // pred_check
          %p222 = pneg %p87
        $region14: #{triangle_multiplication.3} parent=11 // pred_check_branch
          %224 = sbr.rel (%p222) target = $region16
        $region15: #{triangle_multiplication.3} parent=11 // pred_region
          _
        $region16: #{triangle_multiplication.3} parent=11 // pred_fallthru
          _
        // Predicated region
        $region17: #{triangle_multiplication.3} parent=11 // pred_check
          %p225 = pneg %p108
        $region18: #{triangle_multiplication.3} parent=11 // pred_check_branch
          %227 = sbr.rel (%p225) target = $region20
        $region19: #{triangle_multiplication.3} parent=11 // pred_region
          _
        $region20: #{triangle_multiplication.3} parent=11 // pred_fallthru
          _
        // Predicated region
        $region21: #{triangle_multiplication.3} parent=11 // pred_check
          %p228 = pneg %p129
        $region22: #{triangle_multiplication.3} parent=11 // pred_check_branch
          %230 = sbr.rel (%p228) target = $region24
        $region23: #{triangle_multiplication.3} parent=11 // pred_region
          _
        $region24: #{triangle_multiplication.3} parent=11 // pred_fallthru
          _
      $region12: #{triangle_multiplication.3} parent=5 // pred_fallthru
        _
      %p231 = scmp.lt.s32.totalorder %s14, 2
      // Predicated region
      $region25: #{triangle_multiplication.3} parent=5 // pred_check
        %p232 = pneg %p231
      $region26: #{triangle_multiplication.3} parent=5 // pred_check_branch
        %234 = sbr.rel (%p232) target = $region28
      $region27: #{triangle_multiplication.3} parent=5 // pred_region
        // Predicated region
        $region29: #{triangle_multiplication.3} parent=27 // pred_check
          %p235 = pneg %p34
        $region30: #{triangle_multiplication.3} parent=27 // pred_check_branch
          %237 = sbr.rel (%p235) target = $region32
        $region31: #{triangle_multiplication.3} parent=27 // pred_region
          %s238 = sand.u32 %s24, 1
          %s239 = sand.u32 %s24, 1
          %s240 = smul.addr %s239, 32
          %s241 = scalar_lea.vmem [#allocation2], %s240
          %s242 = smul.addr %s14, 8
          %s243 = scalar_lea.vmem %s0, %s242
          // Predicated region
          $region33: #{triangle_multiplication.3} parent=31 // pred_check
            _
          $region34: #{triangle_multiplication.3} parent=31 // pred_check_branch
            %245 = sbr.rel (0) target = $region36
          $region35: #{triangle_multiplication.3} parent=31 // pred_region
            // Predicated region
            $region37: #{triangle_multiplication.3} parent=35 // pred_check
              _
            $region38: #{triangle_multiplication.3} parent=35 // pred_check_branch
              %247 = sbr.rel (0) target = $region40
            $region39: #{triangle_multiplication.3} parent=35 // pred_region
              // Predicated region
              $region52: #{triangle_multiplication.3} parent=39 // pred_check
                _
              $region53: #{triangle_multiplication.3} parent=39 // pred_check_branch
                %269 = sbr.rel (0) target = $region55
              $region54: #{triangle_multiplication.3} parent=39 // pred_region
                loop: start=0, step=1, limit=1
                $region56: #{triangle_multiplication.3} parent=54 // loop_pre_header
                  _
                $region57: #{triangle_multiplication.3} parent=54 // loop_header
                  %s271 = sphi 0, %s275
                  %p272 = scmp.ge.s32.totalorder %s271, 1
                  %s276 = sphi %s243, %s243
                  %s277 = sphi %s241, %s241
                $region58: #{triangle_multiplication.3} parent=54 // loop_header_branch
                  %274 = sbr.rel (%p272) target = $region62
                $region59: #{triangle_multiplication.3} parent=54 // loop_body
                  %v278 = vld [vmem:[%s276] sm:$0xff]
                  %279 = vst [vmem:[%s277] sm:$0xff] %v278
                  %v280 = vld [vmem:[%s276 + $0x10] sm:$0xff]
                  %281 = vst [vmem:[%s277 + $0x8] sm:$0xff] %v280
                  %v282 = vld [vmem:[%s276 + $0x20] sm:$0xff]
                  %283 = vst [vmem:[%s277 + $0x10] sm:$0xff] %v282
                  %v284 = vld [vmem:[%s276 + $0x30] sm:$0xff]
                  %285 = vst [vmem:[%s277 + $0x18] sm:$0xff] %v284
                $region60: #{triangle_multiplication.3} parent=54 // loop_footer
                  %s275 = sadd.s32 1, %s271
                $region61: #{triangle_multiplication.3} parent=54 // loop_footer_branch
                  %270 = sbr.rel target = $region57
                $region62: #{triangle_multiplication.3} parent=54 // loop_exit
                  _
              $region55: #{triangle_multiplication.3} parent=39 // pred_fallthru
                _
              // Predicated region
              $region63: #{triangle_multiplication.3} parent=39 // pred_check
                _
              $region64: #{triangle_multiplication.3} parent=39 // pred_check_branch
                %287 = sbr.rel target = $region66
              $region65: #{triangle_multiplication.3} parent=39 // pred_region
                _
              $region66: #{triangle_multiplication.3} parent=39 // pred_fallthru
                _
            $region40: #{triangle_multiplication.3} parent=35 // pred_fallthru
              _
            // Predicated region
            $region41: #{triangle_multiplication.3} parent=35 // pred_check
              _
            $region42: #{triangle_multiplication.3} parent=35 // pred_check_branch
              %249 = sbr.rel target = $region44
            $region43: #{triangle_multiplication.3} parent=35 // pred_region
              %s251 = ssub.s32 256, 1
              loop: start=0, step=1, limit=1
              $region45: #{triangle_multiplication.3} parent=43 // loop_pre_header
                _
              $region46: #{triangle_multiplication.3} parent=43 // loop_header
                %s253 = sphi 0, %s257
                %p254 = scmp.ge.s32.totalorder %s253, 1
                %s258 = sphi %s243, %s243
                %s259 = sphi %s241, %s241
              $region47: #{triangle_multiplication.3} parent=43 // loop_header_branch
                %256 = sbr.rel (%p254) target = $region51
              $region48: #{triangle_multiplication.3} parent=43 // loop_body
                %v260 = vld [vmem:[%s258] sm:%s251]
                %261 = vst [vmem:[%s259] sm:%s251] %v260
                %v262 = vld [vmem:[%s258 + $0x10] sm:%s251]
                %263 = vst [vmem:[%s259 + $0x8] sm:%s251] %v262
                %v264 = vld [vmem:[%s258 + $0x20] sm:%s251]
                %265 = vst [vmem:[%s259 + $0x10] sm:%s251] %v264
                %v266 = vld [vmem:[%s258 + $0x30] sm:%s251]
                %267 = vst [vmem:[%s259 + $0x18] sm:%s251] %v266
              $region49: #{triangle_multiplication.3} parent=43 // loop_footer
                %s257 = sadd.s32 1, %s253
              $region50: #{triangle_multiplication.3} parent=43 // loop_footer_branch
                %252 = sbr.rel target = $region46
              $region51: #{triangle_multiplication.3} parent=43 // loop_exit
                _
            $region44: #{triangle_multiplication.3} parent=35 // pred_fallthru
              _
          $region36: #{triangle_multiplication.3} parent=31 // pred_fallthru
            _
          %288 = vnop
        $region32: #{triangle_multiplication.3} parent=27 // pred_fallthru
          _
        // Predicated region
        $region67: #{triangle_multiplication.3} parent=27 // pred_check
          %p289 = pneg %p60
        $region68: #{triangle_multiplication.3} parent=27 // pred_check_branch
          %291 = sbr.rel (%p289) target = $region70
        $region69: #{triangle_multiplication.3} parent=27 // pred_region
          %p292 = scmp.lt.s32.totalorder %s14, 1
          %s293 = scalar_select %p292, %s14, 1
          %s294 = scalar_lea.vmem %s1, %s293
        $region70: #{triangle_multiplication.3} parent=27 // pred_fallthru
          _
      $region28: #{triangle_multiplication.3} parent=5 // pred_fallthru
        _
      %p295 = scmp.le.s32.totalorder 1, %s14
      %p296 = scmp.lt.s32.totalorder %s14, 3
      %p297 = pnand %p295, %p296
      %p298 = pneg %p297
      // Predicated region
      $region71: #{triangle_multiplication.3} parent=5 // pred_check
        _
      $region72: #{triangle_multiplication.3} parent=5 // pred_check_branch
        %300 = sbr.rel (%p297) target = $region74
      $region73: #{triangle_multiplication.3} parent=5 // pred_region
        %s301 = ssub.s32 %s14, 1
        %s302 = sand.u32 %s27, 1
        %s303 = sand.u32 %s27, 1
        %s304 = smul.addr %s303, 32
        %s305 = scalar_lea.vmem [#allocation2], %s304
        // Predicated region
        $region75: #{triangle_multiplication.3} parent=73 // pred_check
          %p306 = pneg %p40
        $region76: #{triangle_multiplication.3} parent=73 // pred_check_branch
          %308 = sbr.rel (%p306) target = $region78
        $region77: #{triangle_multiplication.3} parent=73 // pred_region
          _
        $region78: #{triangle_multiplication.3} parent=73 // pred_fallthru
          _
        %s309 = sand.u32 %s27, 1
        %s310 = sand.u32 %s27, 1
        %s311 = smul.addr %s310, 32
        %s312 = scalar_lea.vmem [#allocation2], %s311
        %p313 = pneg %p40
        %p314 = pneg %p37
        %p315 = scmp.lt.s32.totalorder %s19, 1
        %s316 = scalar_select %p315, %s19, 1
        %s317 = scalar_lea.vmem %s1, %s316
        %p318 = pneg %p66
        %p319 = pneg %p63
        %p320 = pneg %p87
        %p321 = pneg %p84
        %p322 = pneg %p108
        %p323 = pneg %p105
        %p324 = pneg %p129
        %p325 = pneg %p126
        %p326 = pneg %p155
        %p327 = pneg %p152
        %s328 = sand.u32 %s142, 1
        %s329 = sand.u32 %s142, 1
        %s330 = smul.addr %s329, 16
        %s331 = scalar_lea.vmem [#allocation3], %s330
        %p332 = pneg %p181
        %p333 = pneg %p178
        %s334 = sand.u32 %s168, 1
        %s335 = sand.u32 %s168, 1
        %s336 = smul.addr %s335, 16
        %s337 = scalar_lea.vmem [#allocation4], %s336
        %p338 = pneg %p207
        %p339 = pneg %p204
        %s340 = sand.u32 %s194, 1
        %s341 = sand.u32 %s194, 1
        %s342 = smul.addr %s341, 32
        %s343 = scalar_lea.vmem [#allocation5], %s342
        %p344 = scmp.lt.s32.totalorder %s19, 1
        %s345 = scalar_select %p344, %s19, 1
        %s346 = scalar_lea.vmem %s1, %s345
        %v348 = vld [vmem:[%s305] sm:$0xff]
        %v349 = vld [vmem:[%s305 + $0x8] sm:$0xff]
        %v350 = vld [vmem:[%s305 + $0x10] sm:$0xff]
        %v351 = vld [vmem:[%s305 + $0x18] sm:$0xff]
        %v352 = vadd.f32 %v348, %v349
        %v353 = vadd.f32 %v352, %v350
        %v354 = vadd.f32 %v353, %v351
        %v355 = vrot.slane %v354, 4
        %v356 = vadd.f32 %v354, %v355
        %v357 = vrot.slane %v356, 2
        %v358 = vadd.f32 %v356, %v357
        %v359 = vrot.slane %v358, 1
        %v360 = vadd.f32 %v358, %v359
        %v361 = vrcp.pop 32.0
        %v362 = vmul.f32 32.0, %v361
        %v363 = vsub.f32 1.0, %v362
        %v364 = vmul.f32 %v361, %v363
        %v365 = vadd.f32 %v361, %v364
        %vm366 = vweird.f32 %v361
        %v367 = vsel %vm366, %v361, %v365
        %v368 = vmul.f32 %v360, %v367
        %v369 = vsub.f32 %v348, %v368
        %v370 = vsub.f32 %v349, %v368
        %v371 = vsub.f32 %v350, %v368
        %v372 = vsub.f32 %v351, %v368
        %v373 = vmul.f32 %v369, %v369
        %v374 = vmul.f32 %v370, %v370
        %v375 = vmul.f32 %v371, %v371
        %v376 = vmul.f32 %v372, %v372
        %v377 = vadd.f32 %v373, %v374
        %v378 = vadd.f32 %v377, %v375
        %v379 = vadd.f32 %v378, %v376
        %v380 = vrot.slane %v379, 4
        %v381 = vadd.f32 %v379, %v380
        %v382 = vrot.slane %v381, 2
        %v383 = vadd.f32 %v381, %v382
        %v384 = vrot.slane %v383, 1
        %v385 = vadd.f32 %v383, %v384
        %v386 = vmul.f32 %v385, %v367
        %v387 = vadd.f32 %v386, 1e-05
        %v388 = vrsqrt.pop %v387
        %v389 = vmul.f32 %v388, %v387
        %v390 = vmul.f32 %v389, %v388
        %v391 = vmul.f32 0.5, %v390
        %v392 = vsub.f32 1.5, %v391
        %v393 = vmul.f32 %v388, %v392
        %vm394 = vweird.f32 %v387
        %vm395 = vweird.f32 %v388
        %vm396 = vmor %vm394, %vm395
        %v397 = vsel %vm396, %v388, %v393
        %v398 = vmul.f32 %v369, %v397
        %v399 = vmul.f32 %v370, %v397
        %v400 = vmul.f32 %v371, %v397
        %v401 = vmul.f32 %v372, %v397
        %v402 = vld [vmem:[%s2] sm:$0xff]
        %v403 = vld [vmem:[%s2 + $0x8] sm:$0xff]
        %v404 = vld [vmem:[%s2 + $0x10] sm:$0xff]
        %v405 = vld [vmem:[%s2 + $0x18] sm:$0xff]
        %407 = vset.pattern.permute.xlu0 0
        %408 = vperm.xlu0 %407, %v402
        %v409 = vpop.permute.xlu0 %408
        %412 = vset.pattern.permute.xlu0 0
        %413 = vperm.xlu0 %412, %v403
        %v414 = vpop.permute.xlu0 %413
        %417 = vset.pattern.permute.xlu0 0
        %418 = vperm.xlu0 %417, %v404
        %v419 = vpop.permute.xlu0 %418
        %422 = vset.pattern.permute.xlu0 0
        %423 = vperm.xlu0 %422, %v405
        %v424 = vpop.permute.xlu0 %423
        %v426 = vmul.f32 %v398, %v409
        %v427 = vmul.f32 %v399, %v414
        %v428 = vmul.f32 %v400, %v419
        %v429 = vmul.f32 %v401, %v424
        %430 = vset.pattern.permute.xlu0 1
        %431 = vperm.xlu0 %430, %v402
        %v432 = vpop.permute.xlu0 %431
        %434 = vset.pattern.permute.xlu0 1
        %435 = vperm.xlu0 %434, %v403
        %v436 = vpop.permute.xlu0 %435
        %438 = vset.pattern.permute.xlu0 1
        %439 = vperm.xlu0 %438, %v404
        %v440 = vpop.permute.xlu0 %439
        %442 = vset.pattern.permute.xlu0 1
        %443 = vperm.xlu0 %442, %v405
        %v444 = vpop.permute.xlu0 %443
        %v446 = vadd.f32 %v426, %v432
        %v447 = vadd.f32 %v427, %v436
        %v448 = vadd.f32 %v428, %v440
        %v449 = vadd.f32 %v429, %v444
        %v450 = vld [vmem:[%s3] sm:$0xf]
        %v451 = vld [vmem:[%s3 + $0x4] sm:$0xf]
        %v452 = vld [vmem:[%s3 + $0x8] sm:$0xf]
        %v453 = vld [vmem:[%s3 + $0xc] sm:$0xf]
        %v454 = vld [vmem:[%s3 + $0x10] sm:$0xf]
        %v455 = vld [vmem:[%s3 + $0x14] sm:$0xf]
        %v456 = vld [vmem:[%s3 + $0x18] sm:$0xf]
        %v457 = vld [vmem:[%s3 + $0x1c] sm:$0xf]
        %v458 = vld [vmem:[%s3 + $0x20] sm:$0xf]
        %v459 = vld [vmem:[%s3 + $0x24] sm:$0xf]
        %v460 = vld [vmem:[%s3 + $0x28] sm:$0xf]
        %v461 = vld [vmem:[%s3 + $0x2c] sm:$0xf]
        %v462 = vld [vmem:[%s3 + $0x30] sm:$0xf]
        %v463 = vld [vmem:[%s3 + $0x34] sm:$0xf]
        %v464 = vld [vmem:[%s3 + $0x38] sm:$0xf]
        %v465 = vld [vmem:[%s3 + $0x3c] sm:$0xf]
        %v466 = vld [vmem:[%s3 + $0x40] sm:$0xf]
        %v467 = vld [vmem:[%s3 + $0x44] sm:$0xf]
        %v468 = vld [vmem:[%s3 + $0x48] sm:$0xf]
        %v469 = vld [vmem:[%s3 + $0x4c] sm:$0xf]
        %v470 = vpack.c.bf16 %v447, %v446
        %v471 = vpack.c.bf16 %v449, %v448
        %v472 = vld [vmem:[%s4] sm:$0xff]
        %v473 = vld [vmem:[%s4 + $0x8] sm:$0xff]
        %v474 = vld [vmem:[%s4 + $0x10] sm:$0xff]
        %v475 = vld [vmem:[%s4 + $0x18] sm:$0xff]
        %v476 = vld [vmem:[%s4 + $0x20] sm:$0xff]
        %v477 = vld [vmem:[%s4 + $0x28] sm:$0xff]
        %v478 = vld [vmem:[%s4 + $0x30] sm:$0xff]
        %v479 = vld [vmem:[%s4 + $0x38] sm:$0xff]
        %v480 = vld [vmem:[%s4 + $0x40] sm:$0xff]
        %v481 = vld [vmem:[%s4 + $0x48] sm:$0xff]
        %v482 = vld [vmem:[%s4 + $0x50] sm:$0xff]
        %v483 = vld [vmem:[%s4 + $0x58] sm:$0xff]
        %v484 = vld [vmem:[%s4 + $0x60] sm:$0xff]
        %v485 = vld [vmem:[%s4 + $0x68] sm:$0xff]
        %v486 = vld [vmem:[%s4 + $0x70] sm:$0xff]
        %v487 = vld [vmem:[%s4 + $0x78] sm:$0xff]
        %v488 = vld [vmem:[%s4 + $0x80] sm:$0xff]
        %v489 = vld [vmem:[%s4 + $0x88] sm:$0xff]
        %v490 = vld [vmem:[%s4 + $0x90] sm:$0xff]
        %v491 = vld [vmem:[%s4 + $0x98] sm:$0xff]
        %493 = vset.pattern.permute.xlu0 0
        %494 = vperm.xlu0 %493, %v472
        %v495 = vpop.permute.xlu0 %494
        %498 = vset.pattern.permute.xlu0 0
        %499 = vperm.xlu0 %498, %v473
        %v500 = vpop.permute.xlu0 %499
        %503 = vset.pattern.permute.xlu0 0
        %504 = vperm.xlu0 %503, %v474
        %v505 = vpop.permute.xlu0 %504
        %508 = vset.pattern.permute.xlu0 0
        %509 = vperm.xlu0 %508, %v475
        %v510 = vpop.permute.xlu0 %509
        %513 = vset.pattern.permute.xlu0 0
        %514 = vperm.xlu0 %513, %v476
        %v515 = vpop.permute.xlu0 %514
        %518 = vset.pattern.permute.xlu0 0
        %519 = vperm.xlu0 %518, %v477
        %v520 = vpop.permute.xlu0 %519
        %523 = vset.pattern.permute.xlu0 0
        %524 = vperm.xlu0 %523, %v478
        %v525 = vpop.permute.xlu0 %524
        %528 = vset.pattern.permute.xlu0 0
        %529 = vperm.xlu0 %528, %v479
        %v530 = vpop.permute.xlu0 %529
        %533 = vset.pattern.permute.xlu0 0
        %534 = vperm.xlu0 %533, %v480
        %v535 = vpop.permute.xlu0 %534
        %538 = vset.pattern.permute.xlu0 0
        %539 = vperm.xlu0 %538, %v481
        %v540 = vpop.permute.xlu0 %539
        %543 = vset.pattern.permute.xlu0 0
        %544 = vperm.xlu0 %543, %v482
        %v545 = vpop.permute.xlu0 %544
        %548 = vset.pattern.permute.xlu0 0
        %549 = vperm.xlu0 %548, %v483
        %v550 = vpop.permute.xlu0 %549
        %553 = vset.pattern.permute.xlu0 0
        %554 = vperm.xlu0 %553, %v484
        %v555 = vpop.permute.xlu0 %554
        %558 = vset.pattern.permute.xlu0 0
        %559 = vperm.xlu0 %558, %v485
        %v560 = vpop.permute.xlu0 %559
        %563 = vset.pattern.permute.xlu0 0
        %564 = vperm.xlu0 %563, %v486
        %v565 = vpop.permute.xlu0 %564
        %568 = vset.pattern.permute.xlu0 0
        %569 = vperm.xlu0 %568, %v487
        %v570 = vpop.permute.xlu0 %569
        %573 = vset.pattern.permute.xlu0 0
        %574 = vperm.xlu0 %573, %v488
        %v575 = vpop.permute.xlu0 %574
        %578 = vset.pattern.permute.xlu0 0
        %579 = vperm.xlu0 %578, %v489
        %v580 = vpop.permute.xlu0 %579
        %583 = vset.pattern.permute.xlu0 0
        %584 = vperm.xlu0 %583, %v490
        %v585 = vpop.permute.xlu0 %584
        %588 = vset.pattern.permute.xlu0 0
        %589 = vperm.xlu0 %588, %v491
        %v590 = vpop.permute.xlu0 %589
        %v612 = vunpack.c.l.b16 %v450
        %v613 = vunpack.c.l.b16 %v451
        %v614 = vunpack.c.l.b16 %v452
        %v615 = vunpack.c.l.b16 %v453
        %v616 = vunpack.c.l.b16 %v454
        %v617 = vunpack.c.l.b16 %v455
        %v618 = vunpack.c.l.b16 %v456
        %v619 = vunpack.c.l.b16 %v457
        %v620 = vunpack.c.l.b16 %v458
        %v621 = vunpack.c.l.b16 %v459
        %v622 = vunpack.c.l.b16 %v460
        %v623 = vunpack.c.l.b16 %v461
        %v624 = vunpack.c.l.b16 %v462
        %v625 = vunpack.c.l.b16 %v463
        %v626 = vunpack.c.l.b16 %v464
        %v627 = vunpack.c.l.b16 %v465
        %v628 = vunpack.c.l.b16 %v466
        %v629 = vunpack.c.l.b16 %v467
        %v630 = vunpack.c.l.b16 %v468
        %v631 = vunpack.c.l.b16 %v469
        %v632 = vpack.c.b16 %v613, %v612
        %v633 = vpack.c.b16 %v615, %v614
        %v634 = vpack.c.b16 %v617, %v616
        %v635 = vpack.c.b16 %v619, %v618
        %v636 = vpack.c.b16 %v621, %v620
        %v637 = vpack.c.b16 %v623, %v622
        %v638 = vpack.c.b16 %v625, %v624
        %v639 = vpack.c.b16 %v627, %v626
        %v640 = vpack.c.b16 %v629, %v628
        %v641 = vpack.c.b16 %v631, %v630
        %vm642 = vcmask 261120
        %v644 = vsel %vm642, %v632, 0
        %v647 = vsel %vm642, %v633, 0
        %v650 = vsel %vm642, %v634, 0
        %v653 = vsel %vm642, %v635, 0
        %v656 = vsel %vm642, %v636, 0
        %v659 = vsel %vm642, %v637, 0
        %v662 = vsel %vm642, %v638, 0
        %v665 = vsel %vm642, %v639, 0
        %v668 = vsel %vm642, %v640, 0
        %v671 = vsel %vm642, %v641, 0
        %673 = vmatpush.bf16.msra.mxu0 0
        %674 = vmatpush.bf16.msra.mxu0 0
        %675 = vmatpush.bf16.msra.mxu0 0
        %676 = vmatpush.bf16.msra.mxu0 0
        %677 = vmatpush.bf16.msra.mxu0 0
        %678 = vmatpush.bf16.msra.mxu0 0
        %679 = vmatpush.bf16.msra.mxu0 %v471
        %680 = vmatpush.bf16.msra.mxu0 %v470
        %681 = vmatmul.bf16.gmra.mxu0 %v644
        %v682 = vpop.f32.mrf.mxu0
        %v683 = vadd.f32 %v495, %v682
        %v684 = vpop.f32.mrf.mxu0
        %v685 = vadd.f32 %v500, %v684
        %686 = vmatmul.bf16.gmra.mxu0 %v647
        %v687 = vpop.f32.mrf.mxu0
        %v688 = vadd.f32 %v505, %v687
        %v689 = vpop.f32.mrf.mxu0
        %v690 = vadd.f32 %v510, %v689
        %691 = vmatmul.bf16.gmra.mxu0 %v650
        %v692 = vpop.f32.mrf.mxu0
        %v693 = vadd.f32 %v515, %v692
        %v694 = vpop.f32.mrf.mxu0
        %v695 = vadd.f32 %v520, %v694
        %696 = vmatmul.bf16.gmra.mxu0 %v653
        %v697 = vpop.f32.mrf.mxu0
        %v698 = vadd.f32 %v525, %v697
        %v699 = vpop.f32.mrf.mxu0
        %v700 = vadd.f32 %v530, %v699
        %701 = vmatmul.bf16.gmra.mxu0 %v656
        %v702 = vpop.f32.mrf.mxu0
        %v703 = vadd.f32 %v535, %v702
        %v704 = vpop.f32.mrf.mxu0
        %v705 = vadd.f32 %v540, %v704
        %706 = vmatmul.bf16.gmra.mxu0 %v659
        %v707 = vpop.f32.mrf.mxu0
        %v708 = vadd.f32 %v545, %v707
        %v709 = vpop.f32.mrf.mxu0
        %v710 = vadd.f32 %v550, %v709
        %711 = vmatmul.bf16.gmra.mxu0 %v662
        %v712 = vpop.f32.mrf.mxu0
        %v713 = vadd.f32 %v555, %v712
        %v714 = vpop.f32.mrf.mxu0
        %v715 = vadd.f32 %v560, %v714
        %716 = vmatmul.bf16.gmra.mxu0 %v665
        %v717 = vpop.f32.mrf.mxu0
        %v718 = vadd.f32 %v565, %v717
        %v719 = vpop.f32.mrf.mxu0
        %v720 = vadd.f32 %v570, %v719
        %721 = vmatmul.bf16.gmra.mxu0 %v668
        %v722 = vpop.f32.mrf.mxu0
        %v723 = vadd.f32 %v575, %v722
        %v724 = vpop.f32.mrf.mxu0
        %v725 = vadd.f32 %v580, %v724
        %726 = vmatmul.bf16.gmra.mxu0 %v671
        %v727 = vpop.f32.mrf.mxu0
        %v728 = vadd.f32 %v585, %v727
        %v729 = vpop.f32.mrf.mxu0
        %v730 = vadd.f32 %v590, %v729
        %731 = vdwg.mxu0
        %v732 = vld [vmem:[%s346] sm:$0x1]
        %v734 = vperm.slane %v732, 0
        %v736 = vmul.f32 %v734, %v683
        %v737 = vmul.f32 %v734, %v685
        %v738 = vmul.f32 %v734, %v688
        %v739 = vmul.f32 %v734, %v690
        %v740 = vxor.u32 %v703, 2147483648
        %v741 = vxor.u32 %v705, 2147483648
        %v742 = vxor.u32 %v708, 2147483648
        %v743 = vxor.u32 %v710, 2147483648
        %v744 = vmul.f32 %v740, 1.442695
        %v745 = vpow.pop %v744
        %v746 = vmul.f32 %v741, 1.442695
        %v747 = vpow.pop %v746
        %v748 = vmul.f32 %v742, 1.442695
        %v749 = vpow.pop %v748
        %v750 = vmul.f32 %v743, 1.442695
        %v751 = vpow.pop %v750
        %v752 = vadd.f32 %v745, 1.0
        %v753 = vadd.f32 %v747, 1.0
        %v754 = vadd.f32 %v749, 1.0
        %v755 = vadd.f32 %v751, 1.0
        %v756 = vrcp.pop %v752
        %v757 = vmul.f32 %v752, %v756
        %v758 = vsub.f32 1.0, %v757
        %v759 = vmul.f32 %v756, %v758
        %v760 = vadd.f32 %v756, %v759
        %vm761 = vweird.f32 %v752
        %vm762 = vweird.f32 %v756
        %vm763 = vmor %vm761, %vm762
        %v764 = vsel %vm763, %v756, %v760
        %v765 = vand.u32 2147483647, %v752
        %vm766 = vcmp.eq.f32.partialorder %v765, 8.507059e+37
        %v767 = vand.u32 %v752, 2147483648
        %v768 = vor.u32 1.1754944e-38, %v767
        %v769 = vsel %vm766, %v768, %v764
        %v770 = vmul.f32 1.0, %v769
        %v771 = vrcp.pop %v753
        %v772 = vmul.f32 %v753, %v771
        %v773 = vsub.f32 1.0, %v772
        %v774 = vmul.f32 %v771, %v773
        %v775 = vadd.f32 %v771, %v774
        %vm776 = vweird.f32 %v753
        %vm777 = vweird.f32 %v771
        %vm778 = vmor %vm776, %vm777
        %v779 = vsel %vm778, %v771, %v775
        %v780 = vand.u32 2147483647, %v753
        %vm781 = vcmp.eq.f32.partialorder %v780, 8.507059e+37
        %v782 = vand.u32 %v753, 2147483648
        %v783 = vor.u32 1.1754944e-38, %v782
        %v784 = vsel %vm781, %v783, %v779
        %v785 = vmul.f32 1.0, %v784
        %v786 = vrcp.pop %v754
        %v787 = vmul.f32 %v754, %v786
        %v788 = vsub.f32 1.0, %v787
        %v789 = vmul.f32 %v786, %v788
        %v790 = vadd.f32 %v786, %v789
        %vm791 = vweird.f32 %v754
        %vm792 = vweird.f32 %v786
        %vm793 = vmor %vm791, %vm792
        %v794 = vsel %vm793, %v786, %v790
        %v795 = vand.u32 2147483647, %v754
        %vm796 = vcmp.eq.f32.partialorder %v795, 8.507059e+37
        %v797 = vand.u32 %v754, 2147483648
        %v798 = vor.u32 1.1754944e-38, %v797
        %v799 = vsel %vm796, %v798, %v794
        %v800 = vmul.f32 1.0, %v799
        %v801 = vrcp.pop %v755
        %v802 = vmul.f32 %v755, %v801
        %v803 = vsub.f32 1.0, %v802
        %v804 = vmul.f32 %v801, %v803
        %v805 = vadd.f32 %v801, %v804
        %vm806 = vweird.f32 %v755
        %vm807 = vweird.f32 %v801
        %vm808 = vmor %vm806, %vm807
        %v809 = vsel %vm808, %v801, %v805
        %v810 = vand.u32 2147483647, %v755
        %vm811 = vcmp.eq.f32.partialorder %v810, 8.507059e+37
        %v812 = vand.u32 %v755, 2147483648
        %v813 = vor.u32 1.1754944e-38, %v812
        %v814 = vsel %vm811, %v813, %v809
        %v815 = vmul.f32 1.0, %v814
        %v816 = vmul.f32 %v736, %v770
        %v817 = vmul.f32 %v737, %v785
        %v818 = vmul.f32 %v738, %v800
        %v819 = vmul.f32 %v739, %v815
        %v820 = vmul.f32 %v734, %v693
        %v821 = vmul.f32 %v734, %v695
        %v822 = vmul.f32 %v734, %v698
        %v823 = vmul.f32 %v734, %v700
        %v824 = vxor.u32 %v713, 2147483648
        %v825 = vxor.u32 %v715, 2147483648
        %v826 = vxor.u32 %v718, 2147483648
        %v827 = vxor.u32 %v720, 2147483648
        %v828 = vmul.f32 %v824, 1.442695
        %v829 = vpow.pop %v828
        %v830 = vmul.f32 %v825, 1.442695
        %v831 = vpow.pop %v830
        %v832 = vmul.f32 %v826, 1.442695
        %v833 = vpow.pop %v832
        %v834 = vmul.f32 %v827, 1.442695
        %v835 = vpow.pop %v834
        %v836 = vadd.f32 %v829, 1.0
        %v837 = vadd.f32 %v831, 1.0
        %v838 = vadd.f32 %v833, 1.0
        %v839 = vadd.f32 %v835, 1.0
        %v840 = vrcp.pop %v836
        %v841 = vmul.f32 %v836, %v840
        %v842 = vsub.f32 1.0, %v841
        %v843 = vmul.f32 %v840, %v842
        %v844 = vadd.f32 %v840, %v843
        %vm845 = vweird.f32 %v836
        %vm846 = vweird.f32 %v840
        %vm847 = vmor %vm845, %vm846
        %v848 = vsel %vm847, %v840, %v844
        %v849 = vand.u32 2147483647, %v836
        %vm850 = vcmp.eq.f32.partialorder %v849, 8.507059e+37
        %v851 = vand.u32 %v836, 2147483648
        %v852 = vor.u32 1.1754944e-38, %v851
        %v853 = vsel %vm850, %v852, %v848
        %v854 = vmul.f32 1.0, %v853
        %v855 = vrcp.pop %v837
        %v856 = vmul.f32 %v837, %v855
        %v857 = vsub.f32 1.0, %v856
        %v858 = vmul.f32 %v855, %v857
        %v859 = vadd.f32 %v855, %v858
        %vm860 = vweird.f32 %v837
        %vm861 = vweird.f32 %v855
        %vm862 = vmor %vm860, %vm861
        %v863 = vsel %vm862, %v855, %v859
        %v864 = vand.u32 2147483647, %v837
        %vm865 = vcmp.eq.f32.partialorder %v864, 8.507059e+37
        %v866 = vand.u32 %v837, 2147483648
        %v867 = vor.u32 1.1754944e-38, %v866
        %v868 = vsel %vm865, %v867, %v863
        %v869 = vmul.f32 1.0, %v868
        %v870 = vrcp.pop %v838
        %v871 = vmul.f32 %v838, %v870
        %v872 = vsub.f32 1.0, %v871
        %v873 = vmul.f32 %v870, %v872
        %v874 = vadd.f32 %v870, %v873
        %vm875 = vweird.f32 %v838
        %vm876 = vweird.f32 %v870
        %vm877 = vmor %vm875, %vm876
        %v878 = vsel %vm877, %v870, %v874
        %v879 = vand.u32 2147483647, %v838
        %vm880 = vcmp.eq.f32.partialorder %v879, 8.507059e+37
        %v881 = vand.u32 %v838, 2147483648
        %v882 = vor.u32 1.1754944e-38, %v881
        %v883 = vsel %vm880, %v882, %v878
        %v884 = vmul.f32 1.0, %v883
        %v885 = vrcp.pop %v839
        %v886 = vmul.f32 %v839, %v885
        %v887 = vsub.f32 1.0, %v886
        %v888 = vmul.f32 %v885, %v887
        %v889 = vadd.f32 %v885, %v888
        %vm890 = vweird.f32 %v839
        %vm891 = vweird.f32 %v885
        %vm892 = vmor %vm890, %vm891
        %v893 = vsel %vm892, %v885, %v889
        %v894 = vand.u32 2147483647, %v839
        %vm895 = vcmp.eq.f32.partialorder %v894, 8.507059e+37
        %v896 = vand.u32 %v839, 2147483648
        %v897 = vor.u32 1.1754944e-38, %v896
        %v898 = vsel %vm895, %v897, %v893
        %v899 = vmul.f32 1.0, %v898
        %v900 = vmul.f32 %v820, %v854
        %v901 = vmul.f32 %v821, %v869
        %v902 = vmul.f32 %v822, %v884
        %v903 = vmul.f32 %v823, %v899
        %v904 = vxor.u32 %v723, 2147483648
        %v905 = vxor.u32 %v725, 2147483648
        %v906 = vxor.u32 %v728, 2147483648
        %v907 = vxor.u32 %v730, 2147483648
        %v908 = vmul.f32 %v904, 1.442695
        %v909 = vpow.pop %v908
        %v910 = vmul.f32 %v905, 1.442695
        %v911 = vpow.pop %v910
        %v912 = vmul.f32 %v906, 1.442695
        %v913 = vpow.pop %v912
        %v914 = vmul.f32 %v907, 1.442695
        %v915 = vpow.pop %v914
        %v916 = vadd.f32 %v909, 1.0
        %v917 = vadd.f32 %v911, 1.0
        %v918 = vadd.f32 %v913, 1.0
        %v919 = vadd.f32 %v915, 1.0
        %v920 = vrcp.pop %v916
        %v921 = vmul.f32 %v916, %v920
        %v922 = vsub.f32 1.0, %v921
        %v923 = vmul.f32 %v920, %v922
        %v924 = vadd.f32 %v920, %v923
        %vm925 = vweird.f32 %v916
        %vm926 = vweird.f32 %v920
        %vm927 = vmor %vm925, %vm926
        %v928 = vsel %vm927, %v920, %v924
        %v929 = vand.u32 2147483647, %v916
        %vm930 = vcmp.eq.f32.partialorder %v929, 8.507059e+37
        %v931 = vand.u32 %v916, 2147483648
        %v932 = vor.u32 1.1754944e-38, %v931
        %v933 = vsel %vm930, %v932, %v928
        %v934 = vmul.f32 1.0, %v933
        %v935 = vrcp.pop %v917
        %v936 = vmul.f32 %v917, %v935
        %v937 = vsub.f32 1.0, %v936
        %v938 = vmul.f32 %v935, %v937
        %v939 = vadd.f32 %v935, %v938
        %vm940 = vweird.f32 %v917
        %vm941 = vweird.f32 %v935
        %vm942 = vmor %vm940, %vm941
        %v943 = vsel %vm942, %v935, %v939
        %v944 = vand.u32 2147483647, %v917
        %vm945 = vcmp.eq.f32.partialorder %v944, 8.507059e+37
        %v946 = vand.u32 %v917, 2147483648
        %v947 = vor.u32 1.1754944e-38, %v946
        %v948 = vsel %vm945, %v947, %v943
        %v949 = vmul.f32 1.0, %v948
        %v950 = vrcp.pop %v918
        %v951 = vmul.f32 %v918, %v950
        %v952 = vsub.f32 1.0, %v951
        %v953 = vmul.f32 %v950, %v952
        %v954 = vadd.f32 %v950, %v953
        %vm955 = vweird.f32 %v918
        %vm956 = vweird.f32 %v950
        %vm957 = vmor %vm955, %vm956
        %v958 = vsel %vm957, %v950, %v954
        %v959 = vand.u32 2147483647, %v918
        %vm960 = vcmp.eq.f32.partialorder %v959, 8.507059e+37
        %v961 = vand.u32 %v918, 2147483648
        %v962 = vor.u32 1.1754944e-38, %v961
        %v963 = vsel %vm960, %v962, %v958
        %v964 = vmul.f32 1.0, %v963
        %v965 = vrcp.pop %v919
        %v966 = vmul.f32 %v919, %v965
        %v967 = vsub.f32 1.0, %v966
        %v968 = vmul.f32 %v965, %v967
        %v969 = vadd.f32 %v965, %v968
        %vm970 = vweird.f32 %v919
        %vm971 = vweird.f32 %v965
        %vm972 = vmor %vm970, %vm971
        %v973 = vsel %vm972, %v965, %v969
        %v974 = vand.u32 2147483647, %v919
        %vm975 = vcmp.eq.f32.partialorder %v974, 8.507059e+37
        %v976 = vand.u32 %v919, 2147483648
        %v977 = vor.u32 1.1754944e-38, %v976
        %v978 = vsel %vm975, %v977, %v973
        %v979 = vmul.f32 1.0, %v978
        %v980 = vpack.c.bf16 %v816, %v816
        %v981 = vpack.c.bf16 %v817, %v817
        %v982 = vpack.c.bf16 %v818, %v818
        %v983 = vpack.c.bf16 %v819, %v819
        %984 = vst [vmem:[%s331] sm:$0xf] %v980
        %985 = vst [vmem:[%s331 + $0x4] sm:$0xf] %v981
        %986 = vst [vmem:[%s331 + $0x8] sm:$0xf] %v982
        %987 = vst [vmem:[%s331 + $0xc] sm:$0xf] %v983
        %v988 = vpack.c.bf16 %v900, %v900
        %v989 = vpack.c.bf16 %v901, %v901
        %v990 = vpack.c.bf16 %v902, %v902
        %v991 = vpack.c.bf16 %v903, %v903
        %992 = vst [vmem:[%s337] sm:$0xf] %v988
        %993 = vst [vmem:[%s337 + $0x4] sm:$0xf] %v989
        %994 = vst [vmem:[%s337 + $0x8] sm:$0xf] %v990
        %995 = vst [vmem:[%s337 + $0xc] sm:$0xf] %v991
        %996 = vst [vmem:[%s343] sm:$0xff] %v934
        %997 = vst [vmem:[%s343 + $0x8] sm:$0xff] %v949
        %998 = vst [vmem:[%s343 + $0x10] sm:$0xff] %v964
        %999 = vst [vmem:[%s343 + $0x18] sm:$0xff] %v979
        %s1000 = sand.u32 %s142, 1
        %s1001 = sand.u32 %s142, 1
        %s1002 = smul.addr %s1001, 16
        %s1003 = scalar_lea.vmem [#allocation3], %s1002
        %s1004 = sand.u32 %s168, 1
        %s1005 = sand.u32 %s168, 1
        %s1006 = smul.addr %s1005, 16
        %s1007 = scalar_lea.vmem [#allocation4], %s1006
        %s1008 = sand.u32 %s194, 1
        %s1009 = sand.u32 %s194, 1
        %s1010 = smul.addr %s1009, 32
        %s1011 = scalar_lea.vmem [#allocation5], %s1010
        // Predicated region
        $region79: #{triangle_multiplication.3} parent=73 // pred_check
          %p1012 = pneg %p152
        $region80: #{triangle_multiplication.3} parent=73 // pred_check_branch
          %1014 = sbr.rel (%p1012) target = $region82
        $region81: #{triangle_multiplication.3} parent=73 // pred_region
          %s1015 = smul.addr %s19, 4
          %s1016 = scalar_lea.vmem %s5, %s1015
          // Predicated region
          $region83: #{triangle_multiplication.3} parent=81 // pred_check
            _
          $region84: #{triangle_multiplication.3} parent=81 // pred_check_branch
            %1018 = sbr.rel (0) target = $region86
          $region85: #{triangle_multiplication.3} parent=81 // pred_region
            // Predicated region
            $region87: #{triangle_multiplication.3} parent=85 // pred_check
              _
            $region88: #{triangle_multiplication.3} parent=85 // pred_check_branch
              %1020 = sbr.rel target = $region90
            $region89: #{triangle_multiplication.3} parent=85 // pred_region
              // Predicated region
              $region102: #{triangle_multiplication.3} parent=89 // pred_check
                _
              $region103: #{triangle_multiplication.3} parent=89 // pred_check_branch
                %1042 = sbr.rel (0) target = $region105
              $region104: #{triangle_multiplication.3} parent=89 // pred_region
                loop: start=0, step=1, limit=1
                $region106: #{triangle_multiplication.3} parent=104 // loop_pre_header
                  _
                $region107: #{triangle_multiplication.3} parent=104 // loop_header
                  %s1044 = sphi 0, %s1048
                  %p1045 = scmp.ge.s32.totalorder %s1044, 1
                  %s1049 = sphi %s1003, %s1003
                  %s1050 = sphi %s1016, %s1016
                $region108: #{triangle_multiplication.3} parent=104 // loop_header_branch
                  %1047 = sbr.rel (%p1045) target = $region112
                $region109: #{triangle_multiplication.3} parent=104 // loop_body
                  _
                $region110: #{triangle_multiplication.3} parent=104 // loop_footer
                  %s1048 = sadd.s32 1, %s1044
                $region111: #{triangle_multiplication.3} parent=104 // loop_footer_branch
                  %1043 = sbr.rel target = $region107
                $region112: #{triangle_multiplication.3} parent=104 // loop_exit
                  _
                %s1052 = ssub.s32 16, 1
                loop: start=0, step=1, limit=1
                $region113: #{triangle_multiplication.3} parent=104 // loop_pre_header
                  _
                $region114: #{triangle_multiplication.3} parent=104 // loop_header
                  %s1054 = sphi 0, %s1058
                  %p1055 = scmp.ge.s32.totalorder %s1054, 1
                  %s1059 = sphi %s1003, %s1003
                  %s1060 = sphi %s1016, %s1016
                $region115: #{triangle_multiplication.3} parent=104 // loop_header_branch
                  %1057 = sbr.rel (%p1055) target = $region119
                $region116: #{triangle_multiplication.3} parent=104 // loop_body
                  %v1061 = vld [vmem:[%s1059] sm:%s1052]
                  %1062 = vst [vmem:[%s1060] sm:%s1052] %v1061
                  %v1063 = vld [vmem:[%s1059 + $0x4] sm:%s1052]
                  %1064 = vst [vmem:[%s1060 + $0x8] sm:%s1052] %v1063
                  %v1065 = vld [vmem:[%s1059 + $0x8] sm:%s1052]
                  %1066 = vst [vmem:[%s1060 + $0x10] sm:%s1052] %v1065
                  %v1067 = vld [vmem:[%s1059 + $0xc] sm:%s1052]
                  %1068 = vst [vmem:[%s1060 + $0x18] sm:%s1052] %v1067
                $region117: #{triangle_multiplication.3} parent=104 // loop_footer
                  %s1058 = sadd.s32 1, %s1054
                $region118: #{triangle_multiplication.3} parent=104 // loop_footer_branch
                  %1053 = sbr.rel target = $region114
                $region119: #{triangle_multiplication.3} parent=104 // loop_exit
                  _
              $region105: #{triangle_multiplication.3} parent=89 // pred_fallthru
                _
            $region90: #{triangle_multiplication.3} parent=85 // pred_fallthru
              _
            // Predicated region
            $region91: #{triangle_multiplication.3} parent=85 // pred_check
              _
            $region92: #{triangle_multiplication.3} parent=85 // pred_check_branch
              %1022 = sbr.rel (0) target = $region94
            $region93: #{triangle_multiplication.3} parent=85 // pred_region
              %s1024 = ssub.s32 16, 1
              loop: start=0, step=1, limit=1
              $region95: #{triangle_multiplication.3} parent=93 // loop_pre_header
                _
              $region96: #{triangle_multiplication.3} parent=93 // loop_header
                %s1026 = sphi 0, %s1030
                %p1027 = scmp.ge.s32.totalorder %s1026, 1
                %s1031 = sphi %s1003, %s1003
                %s1032 = sphi %s1016, %s1016
              $region97: #{triangle_multiplication.3} parent=93 // loop_header_branch
                %1029 = sbr.rel (%p1027) target = $region101
              $region98: #{triangle_multiplication.3} parent=93 // loop_body
                %v1033 = vld [vmem:[%s1031] sm:%s1024]
                %1034 = vst [vmem:[%s1032] sm:%s1024] %v1033
                %v1035 = vld [vmem:[%s1031 + $0x4] sm:%s1024]
                %1036 = vst [vmem:[%s1032 + $0x8] sm:%s1024] %v1035
                %v1037 = vld [vmem:[%s1031 + $0x8] sm:%s1024]
                %1038 = vst [vmem:[%s1032 + $0x10] sm:%s1024] %v1037
                %v1039 = vld [vmem:[%s1031 + $0xc] sm:%s1024]
                %1040 = vst [vmem:[%s1032 + $0x18] sm:%s1024] %v1039
              $region99: #{triangle_multiplication.3} parent=93 // loop_footer
                %s1030 = sadd.s32 1, %s1026
              $region100: #{triangle_multiplication.3} parent=93 // loop_footer_branch
                %1025 = sbr.rel target = $region96
              $region101: #{triangle_multiplication.3} parent=93 // loop_exit
                _
            $region94: #{triangle_multiplication.3} parent=85 // pred_fallthru
              _
          $region86: #{triangle_multiplication.3} parent=81 // pred_fallthru
            _
          %1069 = vnop
        $region82: #{triangle_multiplication.3} parent=73 // pred_fallthru
          _
        // Predicated region
        $region120: #{triangle_multiplication.3} parent=73 // pred_check
          %p1070 = pneg %p178
        $region121: #{triangle_multiplication.3} parent=73 // pred_check_branch
          %1072 = sbr.rel (%p1070) target = $region123
        $region122: #{triangle_multiplication.3} parent=73 // pred_region
          %s1073 = smul.addr %s19, 4
          %s1074 = scalar_lea.vmem %s6, %s1073
          // Predicated region
          $region124: #{triangle_multiplication.3} parent=122 // pred_check
            _
          $region125: #{triangle_multiplication.3} parent=122 // pred_check_branch
            %1076 = sbr.rel (0) target = $region127
          $region126: #{triangle_multiplication.3} parent=122 // pred_region
            // Predicated region
            $region128: #{triangle_multiplication.3} parent=126 // pred_check
              _
            $region129: #{triangle_multiplication.3} parent=126 // pred_check_branch
              %1078 = sbr.rel target = $region131
            $region130: #{triangle_multiplication.3} parent=126 // pred_region
              // Predicated region
              $region143: #{triangle_multiplication.3} parent=130 // pred_check
                _
              $region144: #{triangle_multiplication.3} parent=130 // pred_check_branch
                %1100 = sbr.rel (0) target = $region146
              $region145: #{triangle_multiplication.3} parent=130 // pred_region
                loop: start=0, step=1, limit=1
                $region147: #{triangle_multiplication.3} parent=145 // loop_pre_header
                  _
                $region148: #{triangle_multiplication.3} parent=145 // loop_header
                  %s1102 = sphi 0, %s1106
                  %p1103 = scmp.ge.s32.totalorder %s1102, 1
                  %s1107 = sphi %s1007, %s1007
                  %s1108 = sphi %s1074, %s1074
                $region149: #{triangle_multiplication.3} parent=145 // loop_header_branch
                  %1105 = sbr.rel (%p1103) target = $region153
                $region150: #{triangle_multiplication.3} parent=145 // loop_body
                  _
                $region151: #{triangle_multiplication.3} parent=145 // loop_footer
                  %s1106 = sadd.s32 1, %s1102
                $region152: #{triangle_multiplication.3} parent=145 // loop_footer_branch
                  %1101 = sbr.rel target = $region148
                $region153: #{triangle_multiplication.3} parent=145 // loop_exit
                  _
                %s1110 = ssub.s32 16, 1
                loop: start=0, step=1, limit=1
                $region154: #{triangle_multiplication.3} parent=145 // loop_pre_header
                  _
                $region155: #{triangle_multiplication.3} parent=145 // loop_header
                  %s1112 = sphi 0, %s1116
                  %p1113 = scmp.ge.s32.totalorder %s1112, 1
                  %s1117 = sphi %s1007, %s1007
                  %s1118 = sphi %s1074, %s1074
                $region156: #{triangle_multiplication.3} parent=145 // loop_header_branch
                  %1115 = sbr.rel (%p1113) target = $region160
                $region157: #{triangle_multiplication.3} parent=145 // loop_body
                  %v1119 = vld [vmem:[%s1117] sm:%s1110]
                  %1120 = vst [vmem:[%s1118] sm:%s1110] %v1119
                  %v1121 = vld [vmem:[%s1117 + $0x4] sm:%s1110]
                  %1122 = vst [vmem:[%s1118 + $0x8] sm:%s1110] %v1121
                  %v1123 = vld [vmem:[%s1117 + $0x8] sm:%s1110]
                  %1124 = vst [vmem:[%s1118 + $0x10] sm:%s1110] %v1123
                  %v1125 = vld [vmem:[%s1117 + $0xc] sm:%s1110]
                  %1126 = vst [vmem:[%s1118 + $0x18] sm:%s1110] %v1125
                $region158: #{triangle_multiplication.3} parent=145 // loop_footer
                  %s1116 = sadd.s32 1, %s1112
                $region159: #{triangle_multiplication.3} parent=145 // loop_footer_branch
                  %1111 = sbr.rel target = $region155
                $region160: #{triangle_multiplication.3} parent=145 // loop_exit
                  _
              $region146: #{triangle_multiplication.3} parent=130 // pred_fallthru
                _
            $region131: #{triangle_multiplication.3} parent=126 // pred_fallthru
              _
            // Predicated region
            $region132: #{triangle_multiplication.3} parent=126 // pred_check
              _
            $region133: #{triangle_multiplication.3} parent=126 // pred_check_branch
              %1080 = sbr.rel (0) target = $region135
            $region134: #{triangle_multiplication.3} parent=126 // pred_region
              %s1082 = ssub.s32 16, 1
              loop: start=0, step=1, limit=1
              $region136: #{triangle_multiplication.3} parent=134 // loop_pre_header
                _
              $region137: #{triangle_multiplication.3} parent=134 // loop_header
                %s1084 = sphi 0, %s1088
                %p1085 = scmp.ge.s32.totalorder %s1084, 1
                %s1089 = sphi %s1007, %s1007
                %s1090 = sphi %s1074, %s1074
              $region138: #{triangle_multiplication.3} parent=134 // loop_header_branch
                %1087 = sbr.rel (%p1085) target = $region142
              $region139: #{triangle_multiplication.3} parent=134 // loop_body
                %v1091 = vld [vmem:[%s1089] sm:%s1082]
                %1092 = vst [vmem:[%s1090] sm:%s1082] %v1091
                %v1093 = vld [vmem:[%s1089 + $0x4] sm:%s1082]
                %1094 = vst [vmem:[%s1090 + $0x8] sm:%s1082] %v1093
                %v1095 = vld [vmem:[%s1089 + $0x8] sm:%s1082]
                %1096 = vst [vmem:[%s1090 + $0x10] sm:%s1082] %v1095
                %v1097 = vld [vmem:[%s1089 + $0xc] sm:%s1082]
                %1098 = vst [vmem:[%s1090 + $0x18] sm:%s1082] %v1097
              $region140: #{triangle_multiplication.3} parent=134 // loop_footer
                %s1088 = sadd.s32 1, %s1084
              $region141: #{triangle_multiplication.3} parent=134 // loop_footer_branch
                %1083 = sbr.rel target = $region137
              $region142: #{triangle_multiplication.3} parent=134 // loop_exit
                _
            $region135: #{triangle_multiplication.3} parent=126 // pred_fallthru
              _
          $region127: #{triangle_multiplication.3} parent=122 // pred_fallthru
            _
          %1127 = vnop
        $region123: #{triangle_multiplication.3} parent=73 // pred_fallthru
          _
        // Predicated region
        $region161: #{triangle_multiplication.3} parent=73 // pred_check
          %p1128 = pneg %p204
        $region162: #{triangle_multiplication.3} parent=73 // pred_check_branch
          %1130 = sbr.rel (%p1128) target = $region164
        $region163: #{triangle_multiplication.3} parent=73 // pred_region
          %s1131 = smul.addr %s19, 8
          %s1132 = scalar_lea.vmem %s7, %s1131
          // Predicated region
          $region165: #{triangle_multiplication.3} parent=163 // pred_check
            _
          $region166: #{triangle_multiplication.3} parent=163 // pred_check_branch
            %1134 = sbr.rel (0) target = $region168
          $region167: #{triangle_multiplication.3} parent=163 // pred_region
            // Predicated region
            $region169: #{triangle_multiplication.3} parent=167 // pred_check
              _
            $region170: #{triangle_multiplication.3} parent=167 // pred_check_branch
              %1136 = sbr.rel (0) target = $region172
            $region171: #{triangle_multiplication.3} parent=167 // pred_region
              // Predicated region
              $region184: #{triangle_multiplication.3} parent=171 // pred_check
                _
              $region185: #{triangle_multiplication.3} parent=171 // pred_check_branch
                %1158 = sbr.rel (0) target = $region187
              $region186: #{triangle_multiplication.3} parent=171 // pred_region
                loop: start=0, step=1, limit=1
                $region188: #{triangle_multiplication.3} parent=186 // loop_pre_header
                  _
                $region189: #{triangle_multiplication.3} parent=186 // loop_header
                  %s1160 = sphi 0, %s1164
                  %p1161 = scmp.ge.s32.totalorder %s1160, 1
                  %s1165 = sphi %s1011, %s1011
                  %s1166 = sphi %s1132, %s1132
                $region190: #{triangle_multiplication.3} parent=186 // loop_header_branch
                  %1163 = sbr.rel (%p1161) target = $region194
                $region191: #{triangle_multiplication.3} parent=186 // loop_body
                  %v1167 = vld [vmem:[%s1165] sm:$0xff]
                  %1168 = vst [vmem:[%s1166] sm:$0xff] %v1167
                  %v1169 = vld [vmem:[%s1165 + $0x8] sm:$0xff]
                  %1170 = vst [vmem:[%s1166 + $0x10] sm:$0xff] %v1169
                  %v1171 = vld [vmem:[%s1165 + $0x10] sm:$0xff]
                  %1172 = vst [vmem:[%s1166 + $0x20] sm:$0xff] %v1171
                  %v1173 = vld [vmem:[%s1165 + $0x18] sm:$0xff]
                  %1174 = vst [vmem:[%s1166 + $0x30] sm:$0xff] %v1173
                $region192: #{triangle_multiplication.3} parent=186 // loop_footer
                  %s1164 = sadd.s32 1, %s1160
                $region193: #{triangle_multiplication.3} parent=186 // loop_footer_branch
                  %1159 = sbr.rel target = $region189
                $region194: #{triangle_multiplication.3} parent=186 // loop_exit
                  _
              $region187: #{triangle_multiplication.3} parent=171 // pred_fallthru
                _
              // Predicated region
              $region195: #{triangle_multiplication.3} parent=171 // pred_check
                _
              $region196: #{triangle_multiplication.3} parent=171 // pred_check_branch
                %1176 = sbr.rel target = $region198
              $region197: #{triangle_multiplication.3} parent=171 // pred_region
                _
              $region198: #{triangle_multiplication.3} parent=171 // pred_fallthru
                _
            $region172: #{triangle_multiplication.3} parent=167 // pred_fallthru
              _
            // Predicated region
            $region173: #{triangle_multiplication.3} parent=167 // pred_check
              _
            $region174: #{triangle_multiplication.3} parent=167 // pred_check_branch
              %1138 = sbr.rel target = $region176
            $region175: #{triangle_multiplication.3} parent=167 // pred_region
              %s1140 = ssub.s32 256, 1
              loop: start=0, step=1, limit=1
              $region177: #{triangle_multiplication.3} parent=175 // loop_pre_header
                _
              $region178: #{triangle_multiplication.3} parent=175 // loop_header
                %s1142 = sphi 0, %s1146
                %p1143 = scmp.ge.s32.totalorder %s1142, 1
                %s1147 = sphi %s1011, %s1011
                %s1148 = sphi %s1132, %s1132
              $region179: #{triangle_multiplication.3} parent=175 // loop_header_branch
                %1145 = sbr.rel (%p1143) target = $region183
              $region180: #{triangle_multiplication.3} parent=175 // loop_body
                %v1149 = vld [vmem:[%s1147] sm:%s1140]
                %1150 = vst [vmem:[%s1148] sm:%s1140] %v1149
                %v1151 = vld [vmem:[%s1147 + $0x8] sm:%s1140]
                %1152 = vst [vmem:[%s1148 + $0x10] sm:%s1140] %v1151
                %v1153 = vld [vmem:[%s1147 + $0x10] sm:%s1140]
                %1154 = vst [vmem:[%s1148 + $0x20] sm:%s1140] %v1153
                %v1155 = vld [vmem:[%s1147 + $0x18] sm:%s1140]
                %1156 = vst [vmem:[%s1148 + $0x30] sm:%s1140] %v1155
              $region181: #{triangle_multiplication.3} parent=175 // loop_footer
                %s1146 = sadd.s32 1, %s1142
              $region182: #{triangle_multiplication.3} parent=175 // loop_footer_branch
                %1141 = sbr.rel target = $region178
              $region183: #{triangle_multiplication.3} parent=175 // loop_exit
                _
            $region176: #{triangle_multiplication.3} parent=167 // pred_fallthru
              _
          $region168: #{triangle_multiplication.3} parent=163 // pred_fallthru
            _
          %1177 = vnop
        $region164: #{triangle_multiplication.3} parent=73 // pred_fallthru
          _
      $region74: #{triangle_multiplication.3} parent=5 // pred_fallthru
        _
      %p1178 = scmp.le.s32.totalorder 2, %s14
      // Predicated region
      $region199: #{triangle_multiplication.3} parent=5 // pred_check
        %p1179 = pneg %p1178
      $region200: #{triangle_multiplication.3} parent=5 // pred_check_branch
        %1181 = sbr.rel (%p1179) target = $region202
      $region201: #{triangle_multiplication.3} parent=5 // pred_region
        %s1182 = ssub.s32 %s14, 2
        // Predicated region
        $region203: #{triangle_multiplication.3} parent=201 // pred_check
          %p1183 = pneg %p158
        $region204: #{triangle_multiplication.3} parent=201 // pred_check_branch
          %1185 = sbr.rel (%p1183) target = $region206
        $region205: #{triangle_multiplication.3} parent=201 // pred_region
          %s1186 = sand.u32 %s143, 1
          %s1187 = sand.u32 %s143, 1
          %s1188 = smul.addr %s1187, 16
          %s1189 = scalar_lea.vmem [#allocation3], %s1188
        $region206: #{triangle_multiplication.3} parent=201 // pred_fallthru
          _
        // Predicated region
        $region207: #{triangle_multiplication.3} parent=201 // pred_check
          %p1190 = pneg %p184
        $region208: #{triangle_multiplication.3} parent=201 // pred_check_branch
          %1192 = sbr.rel (%p1190) target = $region210
        $region209: #{triangle_multiplication.3} parent=201 // pred_region
          %s1193 = sand.u32 %s169, 1
          %s1194 = sand.u32 %s169, 1
          %s1195 = smul.addr %s1194, 16
          %s1196 = scalar_lea.vmem [#allocation4], %s1195
        $region210: #{triangle_multiplication.3} parent=201 // pred_fallthru
          _
        // Predicated region
        $region211: #{triangle_multiplication.3} parent=201 // pred_check
          %p1197 = pneg %p210
        $region212: #{triangle_multiplication.3} parent=201 // pred_check_branch
          %1199 = sbr.rel (%p1197) target = $region214
        $region213: #{triangle_multiplication.3} parent=201 // pred_region
          %s1200 = sand.u32 %s195, 1
          %s1201 = sand.u32 %s195, 1
          %s1202 = smul.addr %s1201, 32
          %s1203 = scalar_lea.vmem [#allocation5], %s1202
        $region214: #{triangle_multiplication.3} parent=201 // pred_fallthru
          _
      $region202: #{triangle_multiplication.3} parent=5 // pred_fallthru
        _
    $region6: #{triangle_multiplication.3} parent=1 // loop_footer
      %s18 = sadd.s32 1, %s14
    $region7: #{triangle_multiplication.3} parent=1 // loop_footer_branch
      %13 = sbr.rel target = $region3
    $region8: #{triangle_multiplication.3} parent=1 // loop_exit
      _

// kernel: triangle_multiplication.5
$region0: #{triangle_multiplication.5}
  #allocation0 [shape = 'u32[]', space=smem, size = 0x4, offset = 0x4, fixed_abs, tag = 'smem constant byte address 0x4 - core index']
  #allocation1 [shape = 'u32[72,128]{1,0:T(1,128)}', space=vmem, size = 0x9000, scoped, tag = 'internal scratch']
  %s0 = inlined_call_operand.vmem [shape: f32[32,256], index: 0, kind: input, shape index: {}]
  %s1 = inlined_call_operand.vmem [shape: f32[32,256], index: 1, kind: input, shape index: {}]
  %s2 = inlined_call_operand.vmem [shape: f32[32,2], index: 2, kind: input, shape index: {}]
  %s3 = inlined_call_operand.vmem [shape: bf16[32,32], index: 3, kind: input, shape index: {}]
  %s4 = inlined_call_operand.vmem [shape: f32[32,1], index: 4, kind: input, shape index: {}]
  %s5 = inlined_call_operand.vmem [shape: f32[32,256], index: 5, kind: output, shape index: {}]
  %s6 = sld [smem:[#allocation0]]
  $region163: #{triangle_multiplication.5} parent=0
    _
  %s8 = ssub.s32 1, %s6
  %s9 = scalar_select 0, %s8, %s6
  $region1: #{triangle_multiplication.5} parent=0
    #allocation2 [shape = 'u8[32768]{0}', space=vmem, size = 0x8000, scoped, tag = 'input window, operand 0']
    #allocation3 [shape = 'u8[32768]{0}', space=vmem, size = 0x8000, scoped, tag = 'input window, operand 1']
    #allocation4 [shape = 'u8[32768]{0}', space=vmem, size = 0x8000, scoped, tag = 'output window, operand 0']
    loop: start=0, step=1, limit=4
    $region2: #{triangle_multiplication.5} parent=1 // loop_pre_header
      _
    $region3: #{triangle_multiplication.5} parent=1 // loop_header
      %s11 = sphi 0, %s15
      %p12 = scmp.ge.s32.totalorder %s11, 4
      %s21 = sphi 0, %s23
      %s24 = sphi 0, %s21
      %s25 = sphi 0, %s24
      %s41 = sphi 0, %s25
      %s47 = sphi 0, %s49
      %s50 = sphi 0, %s47
      %s51 = sphi 0, %s50
      %s67 = sphi 0, %s51
      %s71 = sphi 0, %s71
      %s73 = sphi 0, %s71
      %s74 = sphi 0, %s73
      %s88 = sphi 0, %s74
      %s92 = sphi 0, %s92
      %s94 = sphi 0, %s92
      %s95 = sphi 0, %s94
      %s109 = sphi 0, %s95
      %s113 = sphi 0, %s113
      %s115 = sphi 0, %s113
      %s116 = sphi 0, %s115
      %s130 = sphi 0, %s116
      %s136 = sphi 0, %s138
      %s139 = sphi 0, %s136
      %s140 = sphi 0, %s139
      %s156 = sphi 0, %s140
    $region4: #{triangle_multiplication.5} parent=1 // loop_header_branch
      %14 = sbr.rel (%p12) target = $region8
    $region5: #{triangle_multiplication.5} parent=1 // loop_body
      %s16 = ssub.s32 %s11, 1
      %s17 = ssub.s32 %s11, 2
      %s18 = sadd.s32 %s11, 1
      %s19 = ssub.s32 %s11, %s18
      %p20 = scmp.eq.s32.totalorder %s19, 0
      %s22 = sadd.s32 %s21, 1
      %s23 = scalar_select %p20, %s21, %s22
      %p26 = pneg %p20
      %p27 = scmp.eq.s32.totalorder %s11, 1
      %p28 = por %p26, %p27
      %p29 = scmp.ne.s32.totalorder %s21, %s24
      %p30 = scmp.eq.s32.totalorder %s11, 0
      %p31 = por %p29, %p30
      %p32 = scmp.ne.s32.totalorder %s21, %s24
      %p33 = scmp.eq.s32.totalorder %s16, 1
      %p34 = por %p32, %p33
      %p35 = scmp.ne.s32.totalorder %s24, %s25
      %p36 = scmp.eq.s32.totalorder %s16, 0
      %p37 = por %p35, %p36
      %p38 = scmp.ne.s32.totalorder %s24, %s25
      %p39 = scmp.eq.s32.totalorder %s17, 1
      %p40 = por %p38, %p39
      %p42 = scmp.ne.s32.totalorder %s25, %s41
      %p43 = scmp.eq.s32.totalorder %s17, 0
      %p44 = por %p42, %p43
      %s45 = ssub.s32 %s11, %s18
      %p46 = scmp.eq.s32.totalorder %s45, 0
      %s48 = sadd.s32 %s47, 1
      %s49 = scalar_select %p46, %s47, %s48
      %p52 = pneg %p46
      %p53 = scmp.eq.s32.totalorder %s11, 1
      %p54 = por %p52, %p53
      %p55 = scmp.ne.s32.totalorder %s47, %s50
      %p56 = scmp.eq.s32.totalorder %s11, 0
      %p57 = por %p55, %p56
      %p58 = scmp.ne.s32.totalorder %s47, %s50
      %p59 = scmp.eq.s32.totalorder %s16, 1
      %p60 = por %p58, %p59
      %p61 = scmp.ne.s32.totalorder %s50, %s51
      %p62 = scmp.eq.s32.totalorder %s16, 0
      %p63 = por %p61, %p62
      %p64 = scmp.ne.s32.totalorder %s50, %s51
      %p65 = scmp.eq.s32.totalorder %s17, 1
      %p66 = por %p64, %p65
      %p68 = scmp.ne.s32.totalorder %s51, %s67
      %p69 = scmp.eq.s32.totalorder %s17, 0
      %p70 = por %p68, %p69
      %s72 = sadd.s32 %s71, 1
      %p75 = scmp.eq.s32.totalorder %s11, 1
      %p76 = scmp.ne.s32.totalorder %s71, %s73
      %p77 = scmp.eq.s32.totalorder %s11, 0
      %p78 = por %p76, %p77
      %p79 = scmp.ne.s32.totalorder %s71, %s73
      %p80 = scmp.eq.s32.totalorder %s16, 1
      %p81 = por %p79, %p80
      %p82 = scmp.ne.s32.totalorder %s73, %s74
      %p83 = scmp.eq.s32.totalorder %s16, 0
      %p84 = por %p82, %p83
      %p85 = scmp.ne.s32.totalorder %s73, %s74
      %p86 = scmp.eq.s32.totalorder %s17, 1
      %p87 = por %p85, %p86
      %p89 = scmp.ne.s32.totalorder %s74, %s88
      %p90 = scmp.eq.s32.totalorder %s17, 0
      %p91 = por %p89, %p90
      %s93 = sadd.s32 %s92, 1
      %p96 = scmp.eq.s32.totalorder %s11, 1
      %p97 = scmp.ne.s32.totalorder %s92, %s94
      %p98 = scmp.eq.s32.totalorder %s11, 0
      %p99 = por %p97, %p98
      %p100 = scmp.ne.s32.totalorder %s92, %s94
      %p101 = scmp.eq.s32.totalorder %s16, 1
      %p102 = por %p100, %p101
      %p103 = scmp.ne.s32.totalorder %s94, %s95
      %p104 = scmp.eq.s32.totalorder %s16, 0
      %p105 = por %p103, %p104
      %p106 = scmp.ne.s32.totalorder %s94, %s95
      %p107 = scmp.eq.s32.totalorder %s17, 1
      %p108 = por %p106, %p107
      %p110 = scmp.ne.s32.totalorder %s95, %s109
      %p111 = scmp.eq.s32.totalorder %s17, 0
      %p112 = por %p110, %p111
      %s114 = sadd.s32 %s113, 1
      %p117 = scmp.eq.s32.totalorder %s11, 1
      %p118 = scmp.ne.s32.totalorder %s113, %s115
      %p119 = scmp.eq.s32.totalorder %s11, 0
      %p120 = por %p118, %p119
      %p121 = scmp.ne.s32.totalorder %s113, %s115
      %p122 = scmp.eq.s32.totalorder %s16, 1
      %p123 = por %p121, %p122
      %p124 = scmp.ne.s32.totalorder %s115, %s116
      %p125 = scmp.eq.s32.totalorder %s16, 0
      %p126 = por %p124, %p125
      %p127 = scmp.ne.s32.totalorder %s115, %s116
      %p128 = scmp.eq.s32.totalorder %s17, 1
      %p129 = por %p127, %p128
      %p131 = scmp.ne.s32.totalorder %s116, %s130
      %p132 = scmp.eq.s32.totalorder %s17, 0
      %p133 = por %p131, %p132
      %s134 = ssub.s32 %s11, %s18
      %p135 = scmp.eq.s32.totalorder %s134, 0
      %s137 = sadd.s32 %s136, 1
      %s138 = scalar_select %p135, %s136, %s137
      %p141 = pneg %p135
      %p142 = scmp.eq.s32.totalorder %s11, 1
      %p143 = por %p141, %p142
      %p144 = scmp.ne.s32.totalorder %s136, %s139
      %p145 = scmp.eq.s32.totalorder %s11, 0
      %p146 = por %p144, %p145
      %p147 = scmp.ne.s32.totalorder %s136, %s139
      %p148 = scmp.eq.s32.totalorder %s16, 1
      %p149 = por %p147, %p148
      %p150 = scmp.ne.s32.totalorder %s139, %s140
      %p151 = scmp.eq.s32.totalorder %s16, 0
      %p152 = por %p150, %p151
      %p153 = scmp.ne.s32.totalorder %s139, %s140
      %p154 = scmp.eq.s32.totalorder %s17, 1
      %p155 = por %p153, %p154
      %p157 = scmp.ne.s32.totalorder %s140, %s156
      %p158 = scmp.eq.s32.totalorder %s17, 0
      %p159 = por %p157, %p158
      %p160 = scmp.le.s32.totalorder 1, %s11
      %p161 = scmp.lt.s32.totalorder %s11, 3
      %p162 = pnand %p160, %p161
      %p163 = pneg %p162
      // Predicated region
      $region9: #{triangle_multiplication.5} parent=5 // pred_check
        _
      $region10: #{triangle_multiplication.5} parent=5 // pred_check_branch
        %165 = sbr.rel (%p162) target = $region12
      $region11: #{triangle_multiplication.5} parent=5 // pred_region
        %s166 = ssub.s32 %s11, 1
        // Predicated region
        $region13: #{triangle_multiplication.5} parent=11 // pred_check
          %p167 = pneg %p84
        $region14: #{triangle_multiplication.5} parent=11 // pred_check_branch
          %169 = sbr.rel (%p167) target = $region16
        $region15: #{triangle_multiplication.5} parent=11 // pred_region
          _
        $region16: #{triangle_multiplication.5} parent=11 // pred_fallthru
          _
        // Predicated region
        $region17: #{triangle_multiplication.5} parent=11 // pred_check
          %p170 = pneg %p105
        $region18: #{triangle_multiplication.5} parent=11 // pred_check_branch
          %172 = sbr.rel (%p170) target = $region20
        $region19: #{triangle_multiplication.5} parent=11 // pred_region
          _
        $region20: #{triangle_multiplication.5} parent=11 // pred_fallthru
          _
        // Predicated region
        $region21: #{triangle_multiplication.5} parent=11 // pred_check
          %p173 = pneg %p126
        $region22: #{triangle_multiplication.5} parent=11 // pred_check_branch
          %175 = sbr.rel (%p173) target = $region24
        $region23: #{triangle_multiplication.5} parent=11 // pred_region
          _
        $region24: #{triangle_multiplication.5} parent=11 // pred_fallthru
          _
      $region12: #{triangle_multiplication.5} parent=5 // pred_fallthru
        _
      %p176 = scmp.lt.s32.totalorder %s11, 2
      // Predicated region
      $region25: #{triangle_multiplication.5} parent=5 // pred_check
        %p177 = pneg %p176
      $region26: #{triangle_multiplication.5} parent=5 // pred_check_branch
        %179 = sbr.rel (%p177) target = $region28
      $region27: #{triangle_multiplication.5} parent=5 // pred_region
        // Predicated region
        $region29: #{triangle_multiplication.5} parent=27 // pred_check
          %p180 = pneg %p31
        $region30: #{triangle_multiplication.5} parent=27 // pred_check_branch
          %182 = sbr.rel (%p180) target = $region32
        $region31: #{triangle_multiplication.5} parent=27 // pred_region
          %s183 = sand.u32 %s21, 1
          %s184 = sand.u32 %s21, 1
          %s185 = smul.addr %s184, 32
          %s186 = scalar_lea.vmem [#allocation2], %s185
          %s187 = smul.addr %s11, 8
          %s188 = scalar_lea.vmem %s0, %s187
          // Predicated region
          $region33: #{triangle_multiplication.5} parent=31 // pred_check
            _
          $region34: #{triangle_multiplication.5} parent=31 // pred_check_branch
            %190 = sbr.rel (0) target = $region36
          $region35: #{triangle_multiplication.5} parent=31 // pred_region
            // Predicated region
            $region37: #{triangle_multiplication.5} parent=35 // pred_check
              _
            $region38: #{triangle_multiplication.5} parent=35 // pred_check_branch
              %192 = sbr.rel (0) target = $region40
            $region39: #{triangle_multiplication.5} parent=35 // pred_region
              // Predicated region
              $region52: #{triangle_multiplication.5} parent=39 // pred_check
                _
              $region53: #{triangle_multiplication.5} parent=39 // pred_check_branch
                %214 = sbr.rel (0) target = $region55
              $region54: #{triangle_multiplication.5} parent=39 // pred_region
                loop: start=0, step=1, limit=1
                $region56: #{triangle_multiplication.5} parent=54 // loop_pre_header
                  _
                $region57: #{triangle_multiplication.5} parent=54 // loop_header
                  %s216 = sphi 0, %s220
                  %p217 = scmp.ge.s32.totalorder %s216, 1
                  %s221 = sphi %s188, %s188
                  %s222 = sphi %s186, %s186
                $region58: #{triangle_multiplication.5} parent=54 // loop_header_branch
                  %219 = sbr.rel (%p217) target = $region62
                $region59: #{triangle_multiplication.5} parent=54 // loop_body
                  %v223 = vld [vmem:[%s221] sm:$0xff]
                  %224 = vst [vmem:[%s222] sm:$0xff] %v223
                  %v225 = vld [vmem:[%s221 + $0x10] sm:$0xff]
                  %226 = vst [vmem:[%s222 + $0x8] sm:$0xff] %v225
                  %v227 = vld [vmem:[%s221 + $0x20] sm:$0xff]
                  %228 = vst [vmem:[%s222 + $0x10] sm:$0xff] %v227
                  %v229 = vld [vmem:[%s221 + $0x30] sm:$0xff]
                  %230 = vst [vmem:[%s222 + $0x18] sm:$0xff] %v229
                $region60: #{triangle_multiplication.5} parent=54 // loop_footer
                  %s220 = sadd.s32 1, %s216
                $region61: #{triangle_multiplication.5} parent=54 // loop_footer_branch
                  %215 = sbr.rel target = $region57
                $region62: #{triangle_multiplication.5} parent=54 // loop_exit
                  _
              $region55: #{triangle_multiplication.5} parent=39 // pred_fallthru
                _
              // Predicated region
              $region63: #{triangle_multiplication.5} parent=39 // pred_check
                _
              $region64: #{triangle_multiplication.5} parent=39 // pred_check_branch
                %232 = sbr.rel target = $region66
              $region65: #{triangle_multiplication.5} parent=39 // pred_region
                _
              $region66: #{triangle_multiplication.5} parent=39 // pred_fallthru
                _
            $region40: #{triangle_multiplication.5} parent=35 // pred_fallthru
              _
            // Predicated region
            $region41: #{triangle_multiplication.5} parent=35 // pred_check
              _
            $region42: #{triangle_multiplication.5} parent=35 // pred_check_branch
              %194 = sbr.rel target = $region44
            $region43: #{triangle_multiplication.5} parent=35 // pred_region
              %s196 = ssub.s32 256, 1
              loop: start=0, step=1, limit=1
              $region45: #{triangle_multiplication.5} parent=43 // loop_pre_header
                _
              $region46: #{triangle_multiplication.5} parent=43 // loop_header
                %s198 = sphi 0, %s202
                %p199 = scmp.ge.s32.totalorder %s198, 1
                %s203 = sphi %s188, %s188
                %s204 = sphi %s186, %s186
              $region47: #{triangle_multiplication.5} parent=43 // loop_header_branch
                %201 = sbr.rel (%p199) target = $region51
              $region48: #{triangle_multiplication.5} parent=43 // loop_body
                %v205 = vld [vmem:[%s203] sm:%s196]
                %206 = vst [vmem:[%s204] sm:%s196] %v205
                %v207 = vld [vmem:[%s203 + $0x10] sm:%s196]
                %208 = vst [vmem:[%s204 + $0x8] sm:%s196] %v207
                %v209 = vld [vmem:[%s203 + $0x20] sm:%s196]
                %210 = vst [vmem:[%s204 + $0x10] sm:%s196] %v209
                %v211 = vld [vmem:[%s203 + $0x30] sm:%s196]
                %212 = vst [vmem:[%s204 + $0x18] sm:%s196] %v211
              $region49: #{triangle_multiplication.5} parent=43 // loop_footer
                %s202 = sadd.s32 1, %s198
              $region50: #{triangle_multiplication.5} parent=43 // loop_footer_branch
                %197 = sbr.rel target = $region46
              $region51: #{triangle_multiplication.5} parent=43 // loop_exit
                _
            $region44: #{triangle_multiplication.5} parent=35 // pred_fallthru
              _
          $region36: #{triangle_multiplication.5} parent=31 // pred_fallthru
            _
          %233 = vnop
        $region32: #{triangle_multiplication.5} parent=27 // pred_fallthru
          _
        // Predicated region
        $region67: #{triangle_multiplication.5} parent=27 // pred_check
          %p234 = pneg %p57
        $region68: #{triangle_multiplication.5} parent=27 // pred_check_branch
          %236 = sbr.rel (%p234) target = $region70
        $region69: #{triangle_multiplication.5} parent=27 // pred_region
          %s237 = sand.u32 %s47, 1
          %s238 = sand.u32 %s47, 1
          %s239 = smul.addr %s238, 32
          %s240 = scalar_lea.vmem [#allocation3], %s239
          %s241 = smul.addr %s11, 8
          %s242 = scalar_lea.vmem %s1, %s241
          // Predicated region
          $region71: #{triangle_multiplication.5} parent=69 // pred_check
            _
          $region72: #{triangle_multiplication.5} parent=69 // pred_check_branch
            %244 = sbr.rel (0) target = $region74
          $region73: #{triangle_multiplication.5} parent=69 // pred_region
            // Predicated region
            $region75: #{triangle_multiplication.5} parent=73 // pred_check
              _
            $region76: #{triangle_multiplication.5} parent=73 // pred_check_branch
              %246 = sbr.rel (0) target = $region78
            $region77: #{triangle_multiplication.5} parent=73 // pred_region
              // Predicated region
              $region90: #{triangle_multiplication.5} parent=77 // pred_check
                _
              $region91: #{triangle_multiplication.5} parent=77 // pred_check_branch
                %268 = sbr.rel (0) target = $region93
              $region92: #{triangle_multiplication.5} parent=77 // pred_region
                loop: start=0, step=1, limit=1
                $region94: #{triangle_multiplication.5} parent=92 // loop_pre_header
                  _
                $region95: #{triangle_multiplication.5} parent=92 // loop_header
                  %s270 = sphi 0, %s274
                  %p271 = scmp.ge.s32.totalorder %s270, 1
                  %s275 = sphi %s242, %s242
                  %s276 = sphi %s240, %s240
                $region96: #{triangle_multiplication.5} parent=92 // loop_header_branch
                  %273 = sbr.rel (%p271) target = $region100
                $region97: #{triangle_multiplication.5} parent=92 // loop_body
                  %v277 = vld [vmem:[%s275] sm:$0xff]
                  %278 = vst [vmem:[%s276] sm:$0xff] %v277
                  %v279 = vld [vmem:[%s275 + $0x10] sm:$0xff]
                  %280 = vst [vmem:[%s276 + $0x8] sm:$0xff] %v279
                  %v281 = vld [vmem:[%s275 + $0x20] sm:$0xff]
                  %282 = vst [vmem:[%s276 + $0x10] sm:$0xff] %v281
                  %v283 = vld [vmem:[%s275 + $0x30] sm:$0xff]
                  %284 = vst [vmem:[%s276 + $0x18] sm:$0xff] %v283
                $region98: #{triangle_multiplication.5} parent=92 // loop_footer
                  %s274 = sadd.s32 1, %s270
                $region99: #{triangle_multiplication.5} parent=92 // loop_footer_branch
                  %269 = sbr.rel target = $region95
                $region100: #{triangle_multiplication.5} parent=92 // loop_exit
                  _
              $region93: #{triangle_multiplication.5} parent=77 // pred_fallthru
                _
              // Predicated region
              $region101: #{triangle_multiplication.5} parent=77 // pred_check
                _
              $region102: #{triangle_multiplication.5} parent=77 // pred_check_branch
                %286 = sbr.rel target = $region104
              $region103: #{triangle_multiplication.5} parent=77 // pred_region
                _
              $region104: #{triangle_multiplication.5} parent=77 // pred_fallthru
                _
            $region78: #{triangle_multiplication.5} parent=73 // pred_fallthru
              _
            // Predicated region
            $region79: #{triangle_multiplication.5} parent=73 // pred_check
              _
            $region80: #{triangle_multiplication.5} parent=73 // pred_check_branch
              %248 = sbr.rel target = $region82
            $region81: #{triangle_multiplication.5} parent=73 // pred_region
              %s250 = ssub.s32 256, 1
              loop: start=0, step=1, limit=1
              $region83: #{triangle_multiplication.5} parent=81 // loop_pre_header
                _
              $region84: #{triangle_multiplication.5} parent=81 // loop_header
                %s252 = sphi 0, %s256
                %p253 = scmp.ge.s32.totalorder %s252, 1
                %s257 = sphi %s242, %s242
                %s258 = sphi %s240, %s240
              $region85: #{triangle_multiplication.5} parent=81 // loop_header_branch
                %255 = sbr.rel (%p253) target = $region89
              $region86: #{triangle_multiplication.5} parent=81 // loop_body
                %v259 = vld [vmem:[%s257] sm:%s250]
                %260 = vst [vmem:[%s258] sm:%s250] %v259
                %v261 = vld [vmem:[%s257 + $0x10] sm:%s250]
                %262 = vst [vmem:[%s258 + $0x8] sm:%s250] %v261
                %v263 = vld [vmem:[%s257 + $0x20] sm:%s250]
                %264 = vst [vmem:[%s258 + $0x10] sm:%s250] %v263
                %v265 = vld [vmem:[%s257 + $0x30] sm:%s250]
                %266 = vst [vmem:[%s258 + $0x18] sm:%s250] %v265
              $region87: #{triangle_multiplication.5} parent=81 // loop_footer
                %s256 = sadd.s32 1, %s252
              $region88: #{triangle_multiplication.5} parent=81 // loop_footer_branch
                %251 = sbr.rel target = $region84
              $region89: #{triangle_multiplication.5} parent=81 // loop_exit
                _
            $region82: #{triangle_multiplication.5} parent=73 // pred_fallthru
              _
          $region74: #{triangle_multiplication.5} parent=69 // pred_fallthru
            _
          %287 = vnop
        $region70: #{triangle_multiplication.5} parent=27 // pred_fallthru
          _
      $region28: #{triangle_multiplication.5} parent=5 // pred_fallthru
        _
      %p288 = scmp.le.s32.totalorder 1, %s11
      %p289 = scmp.lt.s32.totalorder %s11, 3
      %p290 = pnand %p288, %p289
      %p291 = pneg %p290
      // Predicated region
      $region105: #{triangle_multiplication.5} parent=5 // pred_check
        _
      $region106: #{triangle_multiplication.5} parent=5 // pred_check_branch
        %293 = sbr.rel (%p290) target = $region108
      $region107: #{triangle_multiplication.5} parent=5 // pred_region
        %s294 = ssub.s32 %s11, 1
        %s295 = sand.u32 %s24, 1
        %s296 = sand.u32 %s24, 1
        %s297 = smul.addr %s296, 32
        %s298 = scalar_lea.vmem [#allocation2], %s297
        // Predicated region
        $region109: #{triangle_multiplication.5} parent=107 // pred_check
          %p299 = pneg %p37
        $region110: #{triangle_multiplication.5} parent=107 // pred_check_branch
          %301 = sbr.rel (%p299) target = $region112
        $region111: #{triangle_multiplication.5} parent=107 // pred_region
          _
        $region112: #{triangle_multiplication.5} parent=107 // pred_fallthru
          _
        %s302 = sand.u32 %s50, 1
        %s303 = sand.u32 %s50, 1
        %s304 = smul.addr %s303, 32
        %s305 = scalar_lea.vmem [#allocation3], %s304
        // Predicated region
        $region113: #{triangle_multiplication.5} parent=107 // pred_check
          %p306 = pneg %p63
        $region114: #{triangle_multiplication.5} parent=107 // pred_check_branch
          %308 = sbr.rel (%p306) target = $region116
        $region115: #{triangle_multiplication.5} parent=107 // pred_region
          _
        $region116: #{triangle_multiplication.5} parent=107 // pred_fallthru
          _
        %s309 = sand.u32 %s24, 1
        %s310 = sand.u32 %s24, 1
        %s311 = smul.addr %s310, 32
        %s312 = scalar_lea.vmem [#allocation2], %s311
        %p313 = pneg %p37
        %p314 = pneg %p34
        %s315 = sand.u32 %s50, 1
        %s316 = sand.u32 %s50, 1
        %s317 = smul.addr %s316, 32
        %s318 = scalar_lea.vmem [#allocation3], %s317
        %p319 = pneg %p63
        %p320 = pneg %p60
        %p321 = pneg %p84
        %p322 = pneg %p81
        %p323 = pneg %p105
        %p324 = pneg %p102
        %p325 = pneg %p126
        %p326 = pneg %p123
        %p327 = pneg %p152
        %p328 = pneg %p149
        %s329 = sand.u32 %s139, 1
        %s330 = sand.u32 %s139, 1
        %s331 = smul.addr %s330, 32
        %s332 = scalar_lea.vmem [#allocation4], %s331
        %v334 = vld [vmem:[%s298] sm:$0xff]
        %v335 = vld [vmem:[%s298 + $0x8] sm:$0xff]
        %v336 = vld [vmem:[%s298 + $0x10] sm:$0xff]
        %v337 = vld [vmem:[%s298 + $0x18] sm:$0xff]
        %v338 = vadd.f32 %v334, %v335
        %v339 = vadd.f32 %v338, %v336
        %v340 = vadd.f32 %v339, %v337
        %v341 = vrot.slane %v340, 4
        %v342 = vadd.f32 %v340, %v341
        %v343 = vrot.slane %v342, 2
        %v344 = vadd.f32 %v342, %v343
        %v345 = vrot.slane %v344, 1
        %v346 = vadd.f32 %v344, %v345
        %v347 = vrcp.pop 32.0
        %v348 = vmul.f32 32.0, %v347
        %v349 = vsub.f32 1.0, %v348
        %v350 = vmul.f32 %v347, %v349
        %v351 = vadd.f32 %v347, %v350
        %vm352 = vweird.f32 %v347
        %v353 = vsel %vm352, %v347, %v351
        %v354 = vmul.f32 %v346, %v353
        %v355 = vsub.f32 %v334, %v354
        %v356 = vsub.f32 %v335, %v354
        %v357 = vsub.f32 %v336, %v354
        %v358 = vsub.f32 %v337, %v354
        %v359 = vmul.f32 %v355, %v355
        %v360 = vmul.f32 %v356, %v356
        %v361 = vmul.f32 %v357, %v357
        %v362 = vmul.f32 %v358, %v358
        %v363 = vadd.f32 %v359, %v360
        %v364 = vadd.f32 %v363, %v361
        %v365 = vadd.f32 %v364, %v362
        %v366 = vrot.slane %v365, 4
        %v367 = vadd.f32 %v365, %v366
        %v368 = vrot.slane %v367, 2
        %v369 = vadd.f32 %v367, %v368
        %v370 = vrot.slane %v369, 1
        %v371 = vadd.f32 %v369, %v370
        %v372 = vmul.f32 %v371, %v353
        %v373 = vadd.f32 %v372, 1e-05
        %v374 = vrsqrt.pop %v373
        %v375 = vmul.f32 %v374, %v373
        %v376 = vmul.f32 %v375, %v374
        %v377 = vmul.f32 0.5, %v376
        %v378 = vsub.f32 1.5, %v377
        %v379 = vmul.f32 %v374, %v378
        %vm380 = vweird.f32 %v373
        %vm381 = vweird.f32 %v374
        %vm382 = vmor %vm380, %vm381
        %v383 = vsel %vm382, %v374, %v379
        %v384 = vmul.f32 %v355, %v383
        %v385 = vmul.f32 %v356, %v383
        %v386 = vmul.f32 %v357, %v383
        %v387 = vmul.f32 %v358, %v383
        %v388 = vld [vmem:[%s2] sm:$0xff]
        %v389 = vld [vmem:[%s2 + $0x8] sm:$0xff]
        %v390 = vld [vmem:[%s2 + $0x10] sm:$0xff]
        %v391 = vld [vmem:[%s2 + $0x18] sm:$0xff]
        %393 = vset.pattern.permute.xlu0 0
        %394 = vperm.xlu0 %393, %v388
        %v395 = vpop.permute.xlu0 %394
        %398 = vset.pattern.permute.xlu0 0
        %399 = vperm.xlu0 %398, %v389
        %v400 = vpop.permute.xlu0 %399
        %403 = vset.pattern.permute.xlu0 0
        %404 = vperm.xlu0 %403, %v390
        %v405 = vpop.permute.xlu0 %404
        %408 = vset.pattern.permute.xlu0 0
        %409 = vperm.xlu0 %408, %v391
        %v410 = vpop.permute.xlu0 %409
        %v412 = vmul.f32 %v384, %v395
        %v413 = vmul.f32 %v385, %v400
        %v414 = vmul.f32 %v386, %v405
        %v415 = vmul.f32 %v387, %v410
        %416 = vset.pattern.permute.xlu0 1
        %417 = vperm.xlu0 %416, %v388
        %v418 = vpop.permute.xlu0 %417
        %420 = vset.pattern.permute.xlu0 1
        %421 = vperm.xlu0 %420, %v389
        %v422 = vpop.permute.xlu0 %421
        %424 = vset.pattern.permute.xlu0 1
        %425 = vperm.xlu0 %424, %v390
        %v426 = vpop.permute.xlu0 %425
        %428 = vset.pattern.permute.xlu0 1
        %429 = vperm.xlu0 %428, %v391
        %v430 = vpop.permute.xlu0 %429
        %v432 = vadd.f32 %v412, %v418
        %v433 = vadd.f32 %v413, %v422
        %v434 = vadd.f32 %v414, %v426
        %v435 = vadd.f32 %v415, %v430
        %v436 = vld [vmem:[%s3] sm:$0xf]
        %v437 = vld [vmem:[%s3 + $0x4] sm:$0xf]
        %v438 = vld [vmem:[%s3 + $0x8] sm:$0xf]
        %v439 = vld [vmem:[%s3 + $0xc] sm:$0xf]
        %v440 = vpack.c.bf16 %v433, %v432
        %v441 = vpack.c.bf16 %v435, %v434
        %v442 = vld [vmem:[%s4] sm:$0xff]
        %v443 = vld [vmem:[%s4 + $0x8] sm:$0xff]
        %v444 = vld [vmem:[%s4 + $0x10] sm:$0xff]
        %v445 = vld [vmem:[%s4 + $0x18] sm:$0xff]
        %447 = vset.pattern.permute.xlu0 0
        %448 = vperm.xlu0 %447, %v442
        %v449 = vpop.permute.xlu0 %448
        %452 = vset.pattern.permute.xlu0 0
        %453 = vperm.xlu0 %452, %v443
        %v454 = vpop.permute.xlu0 %453
        %457 = vset.pattern.permute.xlu0 0
        %458 = vperm.xlu0 %457, %v444
        %v459 = vpop.permute.xlu0 %458
        %462 = vset.pattern.permute.xlu0 0
        %463 = vperm.xlu0 %462, %v445
        %v464 = vpop.permute.xlu0 %463
        %v470 = vunpack.c.l.b16 %v436
        %v471 = vunpack.c.l.b16 %v437
        %v472 = vunpack.c.l.b16 %v438
        %v473 = vunpack.c.l.b16 %v439
        %v474 = vpack.c.b16 %v471, %v470
        %v475 = vpack.c.b16 %v473, %v472
        %vm476 = vcmask 261120
        %v478 = vsel %vm476, %v474, 0
        %v481 = vsel %vm476, %v475, 0
        %483 = vmatpush.bf16.msra.mxu0 0
        %484 = vmatpush.bf16.msra.mxu0 0
        %485 = vmatpush.bf16.msra.mxu0 0
        %486 = vmatpush.bf16.msra.mxu0 0
        %487 = vmatpush.bf16.msra.mxu0 0
        %488 = vmatpush.bf16.msra.mxu0 0
        %489 = vmatpush.bf16.msra.mxu0 %v441
        %490 = vmatpush.bf16.msra.mxu0 %v440
        %491 = vmatmul.bf16.gmra.mxu0 %v478
        %v492 = vpop.f32.mrf.mxu0
        %v493 = vadd.f32 %v449, %v492
        %v494 = vpop.f32.mrf.mxu0
        %v495 = vadd.f32 %v454, %v494
        %496 = vmatmul.bf16.gmra.mxu0 %v481
        %v497 = vpop.f32.mrf.mxu0
        %v498 = vadd.f32 %v459, %v497
        %v499 = vpop.f32.mrf.mxu0
        %v500 = vadd.f32 %v464, %v499
        %501 = vdwg.mxu0
        %v502 = vld [vmem:[%s305] sm:$0xff]
        %v503 = vld [vmem:[%s305 + $0x8] sm:$0xff]
        %v504 = vld [vmem:[%s305 + $0x10] sm:$0xff]
        %v505 = vld [vmem:[%s305 + $0x18] sm:$0xff]
        %v506 = vmul.f32 %v493, %v502
        %v507 = vmul.f32 %v495, %v503
        %v508 = vmul.f32 %v498, %v504
        %v509 = vmul.f32 %v500, %v505
        %510 = vst [vmem:[%s332] sm:$0xff] %v506
        %511 = vst [vmem:[%s332 + $0x8] sm:$0xff] %v507
        %512 = vst [vmem:[%s332 + $0x10] sm:$0xff] %v508
        %513 = vst [vmem:[%s332 + $0x18] sm:$0xff] %v509
        %s514 = sand.u32 %s139, 1
        %s515 = sand.u32 %s139, 1
        %s516 = smul.addr %s515, 32
        %s517 = scalar_lea.vmem [#allocation4], %s516
        // Predicated region
        $region117: #{triangle_multiplication.5} parent=107 // pred_check
          %p518 = pneg %p149
        $region118: #{triangle_multiplication.5} parent=107 // pred_check_branch
          %520 = sbr.rel (%p518) target = $region120
        $region119: #{triangle_multiplication.5} parent=107 // pred_region
          %s521 = smul.addr %s16, 8
          %s522 = scalar_lea.vmem %s5, %s521
          // Predicated region
          $region121: #{triangle_multiplication.5} parent=119 // pred_check
            _
          $region122: #{triangle_multiplication.5} parent=119 // pred_check_branch
            %524 = sbr.rel (0) target = $region124
          $region123: #{triangle_multiplication.5} parent=119 // pred_region
            // Predicated region
            $region125: #{triangle_multiplication.5} parent=123 // pred_check
              _
            $region126: #{triangle_multiplication.5} parent=123 // pred_check_branch
              %526 = sbr.rel (0) target = $region128
            $region127: #{triangle_multiplication.5} parent=123 // pred_region
              // Predicated region
              $region140: #{triangle_multiplication.5} parent=127 // pred_check
                _
              $region141: #{triangle_multiplication.5} parent=127 // pred_check_branch
                %548 = sbr.rel (0) target = $region143
              $region142: #{triangle_multiplication.5} parent=127 // pred_region
                loop: start=0, step=1, limit=1
                $region144: #{triangle_multiplication.5} parent=142 // loop_pre_header
                  _
                $region145: #{triangle_multiplication.5} parent=142 // loop_header
                  %s550 = sphi 0, %s554
                  %p551 = scmp.ge.s32.totalorder %s550, 1
                  %s555 = sphi %s517, %s517
                  %s556 = sphi %s522, %s522
                $region146: #{triangle_multiplication.5} parent=142 // loop_header_branch
                  %553 = sbr.rel (%p551) target = $region150
                $region147: #{triangle_multiplication.5} parent=142 // loop_body
                  %v557 = vld [vmem:[%s555] sm:$0xff]
                  %558 = vst [vmem:[%s556] sm:$0xff] %v557
                  %v559 = vld [vmem:[%s555 + $0x8] sm:$0xff]
                  %560 = vst [vmem:[%s556 + $0x10] sm:$0xff] %v559
                  %v561 = vld [vmem:[%s555 + $0x10] sm:$0xff]
                  %562 = vst [vmem:[%s556 + $0x20] sm:$0xff] %v561
                  %v563 = vld [vmem:[%s555 + $0x18] sm:$0xff]
                  %564 = vst [vmem:[%s556 + $0x30] sm:$0xff] %v563
                $region148: #{triangle_multiplication.5} parent=142 // loop_footer
                  %s554 = sadd.s32 1, %s550
                $region149: #{triangle_multiplication.5} parent=142 // loop_footer_branch
                  %549 = sbr.rel target = $region145
                $region150: #{triangle_multiplication.5} parent=142 // loop_exit
                  _
              $region143: #{triangle_multiplication.5} parent=127 // pred_fallthru
                _
              // Predicated region
              $region151: #{triangle_multiplication.5} parent=127 // pred_check
                _
              $region152: #{triangle_multiplication.5} parent=127 // pred_check_branch
                %566 = sbr.rel target = $region154
              $region153: #{triangle_multiplication.5} parent=127 // pred_region
                _
              $region154: #{triangle_multiplication.5} parent=127 // pred_fallthru
                _
            $region128: #{triangle_multiplication.5} parent=123 // pred_fallthru
              _
            // Predicated region
            $region129: #{triangle_multiplication.5} parent=123 // pred_check
              _
            $region130: #{triangle_multiplication.5} parent=123 // pred_check_branch
              %528 = sbr.rel target = $region132
            $region131: #{triangle_multiplication.5} parent=123 // pred_region
              %s530 = ssub.s32 256, 1
              loop: start=0, step=1, limit=1
              $region133: #{triangle_multiplication.5} parent=131 // loop_pre_header
                _
              $region134: #{triangle_multiplication.5} parent=131 // loop_header
                %s532 = sphi 0, %s536
                %p533 = scmp.ge.s32.totalorder %s532, 1
                %s537 = sphi %s517, %s517
                %s538 = sphi %s522, %s522
              $region135: #{triangle_multiplication.5} parent=131 // loop_header_branch
                %535 = sbr.rel (%p533) target = $region139
              $region136: #{triangle_multiplication.5} parent=131 // loop_body
                %v539 = vld [vmem:[%s537] sm:%s530]
                %540 = vst [vmem:[%s538] sm:%s530] %v539
                %v541 = vld [vmem:[%s537 + $0x8] sm:%s530]
                %542 = vst [vmem:[%s538 + $0x10] sm:%s530] %v541
                %v543 = vld [vmem:[%s537 + $0x10] sm:%s530]
                %544 = vst [vmem:[%s538 + $0x20] sm:%s530] %v543
                %v545 = vld [vmem:[%s537 + $0x18] sm:%s530]
                %546 = vst [vmem:[%s538 + $0x30] sm:%s530] %v545
              $region137: #{triangle_multiplication.5} parent=131 // loop_footer
                %s536 = sadd.s32 1, %s532
              $region138: #{triangle_multiplication.5} parent=131 // loop_footer_branch
                %531 = sbr.rel target = $region134
              $region139: #{triangle_multiplication.5} parent=131 // loop_exit
                _
            $region132: #{triangle_multiplication.5} parent=123 // pred_fallthru
              _
          $region124: #{triangle_multiplication.5} parent=119 // pred_fallthru
            _
          %567 = vnop
        $region120: #{triangle_multiplication.5} parent=107 // pred_fallthru
          _
      $region108: #{triangle_multiplication.5} parent=5 // pred_fallthru
        _
      %p568 = scmp.le.s32.totalorder 2, %s11
      // Predicated region
      $region155: #{triangle_multiplication.5} parent=5 // pred_check
        %p569 = pneg %p568
      $region156: #{triangle_multiplication.5} parent=5 // pred_check_branch
        %571 = sbr.rel (%p569) target = $region158
      $region157: #{triangle_multiplication.5} parent=5 // pred_region
        %s572 = ssub.s32 %s11, 2
        // Predicated region
        $region159: #{triangle_multiplication.5} parent=157 // pred_check
          %p573 = pneg %p155
        $region160: #{triangle_multiplication.5} parent=157 // pred_check_branch
          %575 = sbr.rel (%p573) target = $region162
        $region161: #{triangle_multiplication.5} parent=157 // pred_region
          %s576 = sand.u32 %s140, 1
          %s577 = sand.u32 %s140, 1
          %s578 = smul.addr %s577, 32
          %s579 = scalar_lea.vmem [#allocation4], %s578
        $region162: #{triangle_multiplication.5} parent=157 // pred_fallthru
          _
      $region158: #{triangle_multiplication.5} parent=5 // pred_fallthru
        _
    $region6: #{triangle_multiplication.5} parent=1 // loop_footer
      %s15 = sadd.s32 1, %s11
    $region7: #{triangle_multiplication.5} parent=1 // loop_footer_branch
      %10 = sbr.rel target = $region3
    $region8: #{triangle_multiplication.5} parent=1 // loop_exit
      _

</llo_original>
